<compile_context>
chip_gen: v6e
topology: v6e:2x2x1
jax: 0.10.0
libtpu: 0.0.40
codegen_flags: <defaults>
</compile_context>

<pallas_src>
import math
from functools import partial

import jax
import jax.numpy as jnp
from jax import lax
from jax.experimental import pallas as pl
from jax.experimental.pallas import tpu as pltpu

INF = 1.0e12


def _round_up(x, m):
    return (x + m - 1) // m * m


def _swap_halves(v, half):
    # split-halves RoPE companion: [v_hi | v_lo]; runs only inside the
    # once-per-(b, head-pair) projection, amortized over all query tiles.
    return jnp.concatenate([v[:, half:], v[:, :half]], axis=-1)


def _global_pointer_kernel(x_ref, w_ref, b_ref, maskc_ref, kb_ref, cs_ref,
                           o_ref, q_scr, k_scr, *,
                           head_size, d_pad, heads, block_q, chunk, penalty):
    D = head_size
    Dp = d_pad
    half = D // 2
    hps = heads
    qi = pl.program_id(2)
    S = x_ref.shape[1]                       # padded sequence length
    n_chunks = S // chunk

    # ---- once per (batch, head-pair): projection + RoPE + key masking -------
    @pl.when(qi == 0)
    def _project():
        bias_row = b_ref[0]                                  # (1, hps*2D) f32

        def body(c, carry):
            r0 = pl.multiple_of(c * chunk, chunk)
            xs = x_ref[0, pl.ds(r0, chunk), :]               # (chunk, H) bf16
            proj = jnp.dot(xs, w_ref[0],
                           preferred_element_type=jnp.float32) + bias_row
            cs = cs_ref[pl.ds(r0, chunk), :]                 # (chunk, 2D) f32
            cos = cs[:, :D]                                  # [ c |  c]
            sin = cs[:, D:]                                  # [-s | +s]
            pad = maskc_ref[0, pl.ds(r0, chunk), :]          # (chunk, 1) f32
            for h in range(hps):
                qh = proj[:, h * 2 * D:h * 2 * D + D]        # 1/sqrt(D) pre-folded
                kh = proj[:, h * 2 * D + D:(h + 1) * 2 * D]
                qh = qh * cos + _swap_halves(qh, half) * sin
                kh = (kh * cos + _swap_halves(kh, half) * sin) * pad
                if Dp > D:                                   # lane-dense pad
                    z = jnp.zeros((chunk, Dp - D), jnp.float32)
                    qh = jnp.concatenate([qh, z], axis=-1)
                    kh = jnp.concatenate([kh, z], axis=-1)
                q_scr[h, pl.ds(r0, chunk), :] = qh.astype(q_scr.dtype)
                k_scr[h, c] = jnp.transpose(kh).astype(k_scr.dtype)  # (Dp, chunk)
            return carry

        lax.fori_loop(0, n_chunks, body, 0)

    # ---- per query tile: logits matmuls + fused pad / tril bias -------------
    row0 = pl.multiple_of(qi * block_q, block_q)
    row = row0 + lax.broadcasted_iota(jnp.int32, (block_q, 1), 0)
    q_tiles = [q_scr[h, pl.ds(row0, block_q), :] for h in range(hps)]

    for c in range(n_chunks):
        col0 = c * chunk
        col = col0 + lax.broadcasted_iota(jnp.int32, (1, chunk), 1)
        # key bias (= -(1-pad)*penalty) + lower-triangular penalty, shared
        # across the hps heads of this step.
        bias_c = kb_ref[0, :, col0:col0 + chunk] + \
            jnp.where(row > col, -penalty, 0.0)              # (block_q, chunk)
        for h in range(hps):
            s = jnp.dot(q_tiles[h], k_scr[h, c],
                        preferred_element_type=jnp.float32)  # (block_q, chunk)
            o_ref[0, h, :, col0:col0 + chunk] = (s + bias_c).astype(o_ref.dtype)


def global_pointer_forward(x, attention_mask, W, b, *, ent_type_size, head_size,
                           out_dtype=jnp.float32):
    B, S, H = x.shape
    E, D = ent_type_size, head_size
    assert D % 2 == 0, "RoPE head_size must be even"
    half = D // 2
    scale = 1.0 / math.sqrt(D)

    hps = 2 if E % 2 == 0 else 1             # heads per grid step (wider MXU N)
    S_pad = _round_up(S, 128)
    Dp = _round_up(D, 128)
    out_bytes = jnp.dtype(out_dtype).itemsize

    # If even the smallest query tile blows the output-block budget, fall back
    # to one head per step.
    budget = 8 * 1024 * 1024
    if hps == 2 and 2 * 128 * S_pad * out_bytes > budget:
        hps = 1

    def _pick_block_q():
        for cand in (512, 256, 128):
            if S_pad % cand == 0 and hps * cand * S_pad * out_bytes <= budget:
                return cand
        return 128

    block_q = _pick_block_q()
    chunk = next(c for c in (512, 256, 128) if S_pad % c == 0)
    n_chunks = S_pad // chunk

    # ---- wrapper-side parameter repacking (pure JAX glue, done once) --------
    # De-interleave each head's (even, odd) RoPE pairs -> split-halves layout,
    # fold the 1/sqrt(D) logits scale into the q columns / bias, and group
    # `hps` heads per weight block.
    perm = jnp.concatenate([jnp.arange(0, D, 2), jnp.arange(1, D, 2)])
    Wh = W.reshape(H, E, 2 * D).transpose(1, 0, 2)            # (E, H, 2D)
    Wq = Wh[:, :, :D][:, :, perm] * scale
    Wk = Wh[:, :, D:][:, :, perm]
    Whp = jnp.concatenate([Wq, Wk], axis=-1)                  # (E, H, 2D)
    Wp = (Whp.reshape(E // hps, hps, H, 2 * D)
             .transpose(0, 2, 1, 3)
             .reshape(E // hps, H, hps * 2 * D)).astype(jnp.bfloat16)

    bh = b.reshape(E, 2 * D)
    bq = bh[:, :D][:, perm] * scale
    bk = bh[:, D:][:, perm]
    bp = (jnp.concatenate([bq, bk], axis=-1)
             .reshape(E // hps, 1, hps * 2 * D)).astype(jnp.float32)

    # Merged RoPE table in split-halves layout: [cos|cos | -sin|+sin], (S_pad, 2D).
    pos = jnp.arange(S_pad, dtype=jnp.float32)[:, None]
    idx = jnp.arange(half, dtype=jnp.float32)
    theta = jnp.power(10000.0, -2.0 * idx / D)
    ang = pos * theta[None, :]
    cos_t = jnp.concatenate([jnp.cos(ang), jnp.cos(ang)], axis=-1)
    sin_t = jnp.concatenate([-jnp.sin(ang), jnp.sin(ang)], axis=-1)
    cos_sin = jnp.concatenate([cos_t, sin_t], axis=-1).astype(jnp.float32)

    # Pad sequence to a multiple of 128 (padded keys are masked out; padded
    # query rows are sliced off).  No-op when S is already a multiple of 128.
    if S_pad != S:
        x = jnp.pad(x, ((0, 0), (0, S_pad - S), (0, 0)))
        attention_mask = jnp.pad(attention_mask, ((0, 0), (0, S_pad - S)))

    x_bf = x.astype(jnp.bfloat16)
    mask_f = attention_mask.astype(jnp.float32)
    mask_col = mask_f[:, :, None]                                  # (B, S_pad, 1)
    key_bias = ((mask_f - 1.0) * (INF * scale))[:, None, :]        # (B, 1, S_pad)

    # ---- VMEM budget from actual block sizes (capped by physical VMEM) ------
    blk_bytes = (S_pad * H * 2                      # x block (bf16)
                 + H * hps * 2 * D * 2              # W block (bf16)
                 + hps * 2 * D * 4                  # bias block
                 + S_pad * 4 + S_pad * 4            # mask column + key bias
                 + S_pad * 2 * D * 4                # cos/sin table
                 + hps * block_q * S_pad * out_bytes)   # output block
    scr_bytes = 2 * hps * S_pad * Dp * 2            # q_scr + k_scr (bf16)
    need = 2 * blk_bytes + scr_bytes + (4 << 20)
    cap = 96 * 1024 * 1024
    try:
        cap = int(pltpu.get_tpu_info().vmem_capacity_bytes * 0.9)
    except Exception:
        pass
    vmem_limit = max(16 << 20, min(int(need * 1.15), cap))

    kernel = partial(_global_pointer_kernel, head_size=D, d_pad=Dp, heads=hps,
                     block_q=block_q, chunk=chunk, penalty=INF * scale)

    out = pl.pallas_call(
        kernel,
        out_shape=jax.ShapeDtypeStruct((B, E, S_pad, S_pad), out_dtype),
        grid_spec=pltpu.PrefetchScalarGridSpec(
            num_scalar_prefetch=0,
            grid=(B, E // hps, S_pad // block_q),
            in_specs=[
                pl.BlockSpec((1, S_pad, H), lambda bb, e, q: (bb, 0, 0)),       # x
                pl.BlockSpec((1, H, hps * 2 * D), lambda bb, e, q: (e, 0, 0)),  # W
                pl.BlockSpec((1, 1, hps * 2 * D), lambda bb, e, q: (e, 0, 0)),  # bias
                pl.BlockSpec((1, S_pad, 1), lambda bb, e, q: (bb, 0, 0)),       # pad mask
                pl.BlockSpec((1, 1, S_pad), lambda bb, e, q: (bb, 0, 0)),       # key bias
                pl.BlockSpec((S_pad, 2 * D), lambda bb, e, q: (0, 0)),          # cos|sin
            ],
            out_specs=pl.BlockSpec((1, hps, block_q, S_pad),
                                   lambda bb, e, q: (bb, e, q, 0)),
            scratch_shapes=[
                pltpu.VMEM((hps, S_pad, Dp), jnp.bfloat16),             # rotated q
                pltpu.VMEM((hps, n_chunks, Dp, chunk), jnp.bfloat16),   # rotated k^T
            ]),
        compiler_params=pltpu.CompilerParams(
            dimension_semantics=("parallel", "parallel", "arbitrary"),
            vmem_limit_bytes=vmem_limit),
    )(x_bf, Wp, bp, mask_col, key_bias, cos_sin)

    if S_pad != S:
        out = out[:, :, :S, :S]
    return out


def global_pointer_ref(x, attention_mask, W, b, *, ent_type_size, head_size):
    """Pure-JAX reference mirroring the PyTorch module exactly (f32)."""
    B, S, H = x.shape
    E, D = ent_type_size, head_size
    out = x @ W + b
    out = out.reshape(B, S, E, 2 * D)
    qw, kw = out[..., :D], out[..., D:]
    pos = jnp.arange(S, dtype=jnp.float32)[:, None]
    idx = jnp.arange(D // 2, dtype=jnp.float32)
    theta = jnp.power(10000.0, -2.0 * idx / D)
    ang = pos * theta[None, :]
    emb = jnp.stack([jnp.sin(ang), jnp.cos(ang)], -1).reshape(S, D)
    cos_pos = jnp.repeat(emb[:, 1::2], 2, axis=-1)[None, :, None, :]
    sin_pos = jnp.repeat(emb[:, 0::2], 2, axis=-1)[None, :, None, :]
    qw2 = jnp.stack([-qw[..., 1::2], qw[..., 0::2]], -1).reshape(qw.shape)
    qw = qw * cos_pos + qw2 * sin_pos
    kw2 = jnp.stack([-kw[..., 1::2], kw[..., 0::2]], -1).reshape(kw.shape)
    kw = kw * cos_pos + kw2 * sin_pos
    logits = jnp.einsum('bmhd,bnhd->bhmn', qw, kw)
    pad = attention_mask[:, None, None, :]
    logits = logits * pad - (1.0 - pad) * INF
    tril = jnp.tril(jnp.ones((S, S), jnp.float32), k=-1)
    logits = logits - tril * INF
    return logits / math.sqrt(D)


if __name__ == "__main__":
    B, S, H, E, D = 2, 8, 32, 4, 8
    key = jax.random.PRNGKey(0)
    kx, kw, kb = jax.random.split(key, 3)

    x = jax.random.normal(kx, (B, S, H), jnp.float32)
    W = jax.random.normal(kw, (H, E * 2 * D), jnp.float32) / math.sqrt(H)
    b = jax.random.normal(kb, (E * 2 * D,), jnp.float32) * 0.02
    lengths = jnp.array([S, 5])
    attention_mask = (jnp.arange(S)[None, :] < lengths[:, None]).astype(jnp.float32)

    ref = global_pointer_ref(x, attention_mask, W, b,
                             ent_type_size=E, head_size=D)

    # f32 output (exact module semantics).
    out = global_pointer_forward(x, attention_mask, W, b,
                                 ent_type_size=E, head_size=D)
    out = jax.block_until_ready(out)
    assert out.shape == (B, E, S, S)
    assert jnp.allclose(out, ref, rtol=5e-2, atol=2e-1), \
        float(jnp.max(jnp.abs(out - ref)))

    # bf16 output path (halves HBM write traffic of this output-bound kernel).
    out_bf = global_pointer_forward(x, attention_mask, W, b,
                                    ent_type_size=E, head_size=D,
                                    out_dtype=jnp.bfloat16)
    out_bf = jax.block_until_ready(out_bf)
    assert jnp.allclose(out_bf.astype(jnp.float32), ref, rtol=5e-2, atol=5e-1), \
        float(jnp.max(jnp.abs(out_bf.astype(jnp.float32) - ref)))

    print("KERNEL_OK")
</pallas_src>

<mosaic_0001>
module attributes {stable_mosaic.version = 11 : i64} {
  func.func @_global_pointer_kernel(%arg0: i32, %arg1: i32, %arg2: i32, %arg3: memref<1x128x32xbf16, #tpu.memory_space<vmem>>, %arg4: memref<1x32x32xbf16, #tpu.memory_space<vmem>>, %arg5: memref<1x1x32xf32, #tpu.memory_space<vmem>>, %arg6: memref<1x128x1xf32, #tpu.memory_space<vmem>>, %arg7: memref<1x1x128xf32, #tpu.memory_space<vmem>>, %arg8: memref<128x16xf32, #tpu.memory_space<vmem>>, %arg9: memref<1x2x128x128xf32, #tpu.memory_space<vmem>>, %arg10: memref<2x128x128xbf16, #tpu.memory_space<vmem>>, %arg11: memref<2x1x128x128xbf16, #tpu.memory_space<vmem>>) attributes {dimension_semantics = [#tpu.dimension_semantics<parallel>, #tpu.dimension_semantics<parallel>, #tpu.dimension_semantics<arbitrary>], iteration_bounds = array<i64: 2, 2, 1>, scalar_prefetch = 0 : i64, scratch_operands = 2 : i64, tpu.core_type = #tpu.core_type<tc>, window_params = [{transform_indices = @transform_0, window_bounds = array<i64: 1, 128, 32>}, {transform_indices = @transform_1, window_bounds = array<i64: 1, 32, 32>}, {transform_indices = @transform_2, window_bounds = array<i64: 1, 1, 32>}, {transform_indices = @transform_3, window_bounds = array<i64: 1, 128, 1>}, {transform_indices = @transform_4, window_bounds = array<i64: 1, 1, 128>}, {pipeline_mode = #tpu.pipeline_mode<synchronous>, transform_indices = @transform_5, window_bounds = array<i64: 128, 16>}, {transform_indices = @transform_6, window_bounds = array<i64: 1, 2, 128, 128>}]} {
    %c0_i32 = arith.constant 0 : i32
    %0 = arith.cmpi eq, %arg2, %c0_i32 : i32
    %1 = arith.extui %0 : i1 to i32
    %c0_i32_0 = arith.constant 0 : i32
    %2 = arith.cmpi ne, %1, %c0_i32_0 : i32
    scf.if %2 {
      %c0_26 = arith.constant 0 : index
      %c0_27 = arith.constant 0 : index
      %c0_28 = arith.constant 0 : index
      %41 = vector.load %arg5[%c0_26, %c0_27, %c0_28] : memref<1x1x32xf32, #tpu.memory_space<vmem>>, vector<1x1x32xf32>
      %42 = vector.shape_cast %41 : vector<1x1x32xf32> to vector<1x32xf32>
      %c0_i32_29 = arith.constant 0 : i32
      %c128_i32_30 = arith.constant 128 : i32
      %43 = arith.muli %c0_i32_29, %c128_i32_30 : i32
      %44 = tpu.assume_multiple %43, 128 : i32
      %c0_31 = arith.constant 0 : index
      %45 = arith.index_cast %44 : i32 to index
      %c0_32 = arith.constant 0 : index
      %46 = vector.load %arg3[%c0_31, %45, %c0_32] : memref<1x128x32xbf16, #tpu.memory_space<vmem>>, vector<1x128x32xbf16>
      %47 = vector.shape_cast %46 : vector<1x128x32xbf16> to vector<128x32xbf16>
      %c0_33 = arith.constant 0 : index
      %c0_34 = arith.constant 0 : index
      %c0_35 = arith.constant 0 : index
      %48 = vector.load %arg4[%c0_33, %c0_34, %c0_35] : memref<1x32x32xbf16, #tpu.memory_space<vmem>>, vector<1x32x32xbf16>
      %49 = vector.shape_cast %48 : vector<1x32x32xbf16> to vector<32x32xbf16>
      %cst_36 = arith.constant dense<0.000000e+00> : vector<128x32xf32>
      %50 = tpu.matmul %47, %49, %cst_36 {dimension_numbers = #tpu.dot_dimension_numbers<[1], [0], [0], [1], [0, 0, 1, 1], [], []>} : vector<128x32xbf16>, vector<32x32xbf16>, vector<128x32xf32> -> vector<128x32xf32>
      %51 = vector.broadcast %42 : vector<1x32xf32> to vector<128x32xf32>
      %52 = arith.addf %50, %51 : vector<128x32xf32>
      %53 = arith.index_cast %44 : i32 to index
      %c0_37 = arith.constant 0 : index
      %54 = vector.load %arg8[%53, %c0_37] : memref<128x16xf32, #tpu.memory_space<vmem>>, vector<128x16xf32>
      %55 = vector.extract_strided_slice %54 {offsets = [0, 0], sizes = [128, 8], strides = [1, 1]} : vector<128x16xf32> to vector<128x8xf32>
      %56 = vector.extract_strided_slice %54 {offsets = [0, 8], sizes = [128, 8], strides = [1, 1]} : vector<128x16xf32> to vector<128x8xf32>
      %c0_38 = arith.constant 0 : index
      %57 = arith.index_cast %44 : i32 to index
      %c0_39 = arith.constant 0 : index
      %58 = vector.load %arg6[%c0_38, %57, %c0_39] : memref<1x128x1xf32, #tpu.memory_space<vmem>>, vector<1x128x1xf32>
      %59 = vector.shape_cast %58 : vector<1x128x1xf32> to vector<128x1xf32>
      %60 = vector.extract_strided_slice %52 {offsets = [0, 0], sizes = [128, 8], strides = [1, 1]} : vector<128x32xf32> to vector<128x8xf32>
      %61 = vector.extract_strided_slice %52 {offsets = [0, 8], sizes = [128, 8], strides = [1, 1]} : vector<128x32xf32> to vector<128x8xf32>
      %62 = arith.mulf %60, %55 : vector<128x8xf32>
      %63 = vector.extract_strided_slice %60 {offsets = [0, 4], sizes = [128, 4], strides = [1, 1]} : vector<128x8xf32> to vector<128x4xf32>
      %64 = vector.extract_strided_slice %60 {offsets = [0, 0], sizes = [128, 4], strides = [1, 1]} : vector<128x8xf32> to vector<128x4xf32>
      %65 = tpu.concatenate %63, %64 in 1 : vector<128x4xf32>, vector<128x4xf32> -> vector<128x8xf32>
      %66 = arith.mulf %65, %56 : vector<128x8xf32>
      %67 = arith.addf %62, %66 : vector<128x8xf32>
      %68 = arith.mulf %61, %55 : vector<128x8xf32>
      %69 = vector.extract_strided_slice %61 {offsets = [0, 4], sizes = [128, 4], strides = [1, 1]} : vector<128x8xf32> to vector<128x4xf32>
      %70 = vector.extract_strided_slice %61 {offsets = [0, 0], sizes = [128, 4], strides = [1, 1]} : vector<128x8xf32> to vector<128x4xf32>
      %71 = tpu.concatenate %69, %70 in 1 : vector<128x4xf32>, vector<128x4xf32> -> vector<128x8xf32>
      %72 = arith.mulf %71, %56 : vector<128x8xf32>
      %73 = arith.addf %68, %72 : vector<128x8xf32>
      %74 = vector.broadcast %59 : vector<128x1xf32> to vector<128x8xf32>
      %75 = arith.mulf %73, %74 : vector<128x8xf32>
      %cst_40 = arith.constant 0.000000e+00 : f32
      %76 = vector.broadcast %cst_40 : f32 to vector<128x120xf32>
      %77 = tpu.concatenate %67, %76 in 1 : vector<128x8xf32>, vector<128x120xf32> -> vector<128x128xf32>
      %78 = tpu.concatenate %75, %76 in 1 : vector<128x8xf32>, vector<128x120xf32> -> vector<128x128xf32>
      %79 = arith.truncf %77 : vector<128x128xf32> to vector<128x128xbf16>
      %c0_41 = arith.constant 0 : index
      %80 = arith.index_cast %44 : i32 to index
      %c0_42 = arith.constant 0 : index
      %81 = vector.load %arg10[%c0_41, %80, %c0_42] : memref<2x128x128xbf16, #tpu.memory_space<vmem>>, vector<1x128x128xbf16>
      %82 = vector.shape_cast %81 : vector<1x128x128xbf16> to vector<128x128xbf16>
      %83 = vector.shape_cast %79 : vector<128x128xbf16> to vector<1x128x128xbf16>
      tpu.vector_store %arg10[%c0_41, %80, %c0_42], %83 {strides = array<i32>} : memref<2x128x128xbf16, #tpu.memory_space<vmem>>, vector<1x128x128xbf16>,
      %84 = tpu.transpose %78, [1, 0] : vector<128x128xf32> -> vector<128x128xf32>
      %85 = arith.truncf %84 : vector<128x128xf32> to vector<128x128xbf16>
      %c0_43 = arith.constant 0 : index
      %86 = arith.index_cast %c0_i32_29 : i32 to index
      %c0_44 = arith.constant 0 : index
      %c0_45 = arith.constant 0 : index
      %87 = vector.load %arg11[%c0_43, %86, %c0_44, %c0_45] : memref<2x1x128x128xbf16, #tpu.memory_space<vmem>>, vector<1x1x128x128xbf16>
      %88 = vector.shape_cast %87 : vector<1x1x128x128xbf16> to vector<128x128xbf16>
      %89 = vector.shape_cast %85 : vector<128x128xbf16> to vector<1x1x128x128xbf16>
      tpu.vector_store %arg11[%c0_43, %86, %c0_44, %c0_45], %89 {strides = array<i32>} : memref<2x1x128x128xbf16, #tpu.memory_space<vmem>>, vector<1x1x128x128xbf16>,
      %90 = vector.extract_strided_slice %52 {offsets = [0, 16], sizes = [128, 8], strides = [1, 1]} : vector<128x32xf32> to vector<128x8xf32>
      %91 = vector.extract_strided_slice %52 {offsets = [0, 24], sizes = [128, 8], strides = [1, 1]} : vector<128x32xf32> to vector<128x8xf32>
      %92 = arith.mulf %90, %55 : vector<128x8xf32>
      %93 = vector.extract_strided_slice %90 {offsets = [0, 4], sizes = [128, 4], strides = [1, 1]} : vector<128x8xf32> to vector<128x4xf32>
      %94 = vector.extract_strided_slice %90 {offsets = [0, 0], sizes = [128, 4], strides = [1, 1]} : vector<128x8xf32> to vector<128x4xf32>
      %95 = tpu.concatenate %93, %94 in 1 : vector<128x4xf32>, vector<128x4xf32> -> vector<128x8xf32>
      %96 = arith.mulf %95, %56 : vector<128x8xf32>
      %97 = arith.addf %92, %96 : vector<128x8xf32>
      %98 = arith.mulf %91, %55 : vector<128x8xf32>
      %99 = vector.extract_strided_slice %91 {offsets = [0, 4], sizes = [128, 4], strides = [1, 1]} : vector<128x8xf32> to vector<128x4xf32>
      %100 = vector.extract_strided_slice %91 {offsets = [0, 0], sizes = [128, 4], strides = [1, 1]} : vector<128x8xf32> to vector<128x4xf32>
      %101 = tpu.concatenate %99, %100 in 1 : vector<128x4xf32>, vector<128x4xf32> -> vector<128x8xf32>
      %102 = arith.mulf %101, %56 : vector<128x8xf32>
      %103 = arith.addf %98, %102 : vector<128x8xf32>
      %104 = vector.broadcast %59 : vector<128x1xf32> to vector<128x8xf32>
      %105 = arith.mulf %103, %104 : vector<128x8xf32>
      %cst_46 = arith.constant 0.000000e+00 : f32
      %106 = vector.broadcast %cst_46 : f32 to vector<128x120xf32>
      %107 = tpu.concatenate %97, %106 in 1 : vector<128x8xf32>, vector<128x120xf32> -> vector<128x128xf32>
      %108 = tpu.concatenate %105, %106 in 1 : vector<128x8xf32>, vector<128x120xf32> -> vector<128x128xf32>
      %109 = arith.truncf %107 : vector<128x128xf32> to vector<128x128xbf16>
      %c1_47 = arith.constant 1 : index
      %110 = arith.index_cast %44 : i32 to index
      %c0_48 = arith.constant 0 : index
      %111 = vector.load %arg10[%c1_47, %110, %c0_48] : memref<2x128x128xbf16, #tpu.memory_space<vmem>>, vector<1x128x128xbf16>
      %112 = vector.shape_cast %111 : vector<1x128x128xbf16> to vector<128x128xbf16>
      %113 = vector.shape_cast %109 : vector<128x128xbf16> to vector<1x128x128xbf16>
      tpu.vector_store %arg10[%c1_47, %110, %c0_48], %113 {strides = array<i32>} : memref<2x128x128xbf16, #tpu.memory_space<vmem>>, vector<1x128x128xbf16>,
      %114 = tpu.transpose %108, [1, 0] : vector<128x128xf32> -> vector<128x128xf32>
      %115 = arith.truncf %114 : vector<128x128xf32> to vector<128x128xbf16>
      %c1_49 = arith.constant 1 : index
      %116 = arith.index_cast %c0_i32_29 : i32 to index
      %c0_50 = arith.constant 0 : index
      %c0_51 = arith.constant 0 : index
      %117 = vector.load %arg11[%c1_49, %116, %c0_50, %c0_51] : memref<2x1x128x128xbf16, #tpu.memory_space<vmem>>, vector<1x1x128x128xbf16>
      %118 = vector.shape_cast %117 : vector<1x1x128x128xbf16> to vector<128x128xbf16>
      %119 = vector.shape_cast %115 : vector<128x128xbf16> to vector<1x1x128x128xbf16>
      tpu.vector_store %arg11[%c1_49, %116, %c0_50, %c0_51], %119 {strides = array<i32>} : memref<2x1x128x128xbf16, #tpu.memory_space<vmem>>, vector<1x1x128x128xbf16>,
      %c1_i32 = arith.constant 1 : i32
    } else {
    }
    %c128_i32 = arith.constant 128 : i32
    %3 = arith.muli %arg2, %c128_i32 : i32
    %4 = tpu.assume_multiple %3, 128 : i32
    %5 = tpu.iota {dimensions = array<i32: 0>} : vector<128x1xi32>
    %6 = vector.broadcast %4 : i32 to vector<128x1xi32>
    %7 = arith.addi %6, %5 : vector<128x1xi32>
    %c0 = arith.constant 0 : index
    %8 = arith.index_cast %4 : i32 to index
    %c0_1 = arith.constant 0 : index
    %9 = vector.load %arg10[%c0, %8, %c0_1] : memref<2x128x128xbf16, #tpu.memory_space<vmem>>, vector<1x128x128xbf16>
    %10 = vector.shape_cast %9 : vector<1x128x128xbf16> to vector<128x128xbf16>
    %c1 = arith.constant 1 : index
    %11 = arith.index_cast %4 : i32 to index
    %c0_2 = arith.constant 0 : index
    %12 = vector.load %arg10[%c1, %11, %c0_2] : memref<2x128x128xbf16, #tpu.memory_space<vmem>>, vector<1x128x128xbf16>
    %13 = vector.shape_cast %12 : vector<1x128x128xbf16> to vector<128x128xbf16>
    %14 = tpu.iota {dimensions = array<i32: 1>} : vector<1x128xi32>
    %c0_i32_3 = arith.constant 0 : i32
    %15 = vector.broadcast %c0_i32_3 : i32 to vector<1x128xi32>
    %16 = arith.addi %15, %14 : vector<1x128xi32>
    %c0_4 = arith.constant 0 : index
    %c0_5 = arith.constant 0 : index
    %c0_6 = arith.constant 0 : index
    %17 = vector.load %arg7[%c0_4, %c0_5, %c0_6] : memref<1x1x128xf32, #tpu.memory_space<vmem>>, vector<1x1x128xf32>
    %18 = vector.shape_cast %17 : vector<1x1x128xf32> to vector<1x128xf32>
    %19 = vector.broadcast %7 : vector<128x1xi32> to vector<128x128xi32>
    %20 = vector.broadcast %16 : vector<1x128xi32> to vector<128x128xi32>
    %21 = arith.cmpi sgt, %19, %20 : vector<128x128xi32>
    %cst = arith.constant -3.53553383E+11 : f32
    %cst_7 = arith.constant 0.000000e+00 : f32
    %22 = vector.broadcast %cst : f32 to vector<128x128xf32>
    %23 = vector.broadcast %cst_7 : f32 to vector<128x128xf32>
    %24 = arith.select %21, %22, %23 : vector<128x128xi1>, vector<128x128xf32>
    %25 = vector.broadcast %18 : vector<1x128xf32> to vector<128x128xf32>
    %26 = arith.addf %25, %24 : vector<128x128xf32>
    %c0_8 = arith.constant 0 : index
    %c0_9 = arith.constant 0 : index
    %c0_10 = arith.constant 0 : index
    %c0_11 = arith.constant 0 : index
    %27 = vector.load %arg11[%c0_8, %c0_9, %c0_10, %c0_11] : memref<2x1x128x128xbf16, #tpu.memory_space<vmem>>, vector<1x1x128x128xbf16>
    %28 = vector.shape_cast %27 : vector<1x1x128x128xbf16> to vector<128x128xbf16>
    %cst_12 = arith.constant dense<0.000000e+00> : vector<128x128xf32>
    %29 = tpu.matmul %10, %28, %cst_12 {dimension_numbers = #tpu.dot_dimension_numbers<[1], [0], [0], [1], [0, 0, 1, 1], [], []>} : vector<128x128xbf16>, vector<128x128xbf16>, vector<128x128xf32> -> vector<128x128xf32>
    %30 = arith.addf %29, %26 : vector<128x128xf32>
    %c0_13 = arith.constant 0 : index
    %c0_14 = arith.constant 0 : index
    %c0_15 = arith.constant 0 : index
    %c0_16 = arith.constant 0 : index
    %31 = vector.load %arg9[%c0_13, %c0_14, %c0_15, %c0_16] : memref<1x2x128x128xf32, #tpu.memory_space<vmem>>, vector<1x1x128x128xf32>
    %32 = vector.shape_cast %31 : vector<1x1x128x128xf32> to vector<128x128xf32>
    %33 = vector.shape_cast %30 : vector<128x128xf32> to vector<1x1x128x128xf32>
    tpu.vector_store %arg9[%c0_13, %c0_14, %c0_15, %c0_16], %33 {strides = array<i32>} : memref<1x2x128x128xf32, #tpu.memory_space<vmem>>, vector<1x1x128x128xf32>,
    %c1_17 = arith.constant 1 : index
    %c0_18 = arith.constant 0 : index
    %c0_19 = arith.constant 0 : index
    %c0_20 = arith.constant 0 : index
    %34 = vector.load %arg11[%c1_17, %c0_18, %c0_19, %c0_20] : memref<2x1x128x128xbf16, #tpu.memory_space<vmem>>, vector<1x1x128x128xbf16>
    %35 = vector.shape_cast %34 : vector<1x1x128x128xbf16> to vector<128x128xbf16>
    %cst_21 = arith.constant dense<0.000000e+00> : vector<128x128xf32>
    %36 = tpu.matmul %13, %35, %cst_21 {dimension_numbers = #tpu.dot_dimension_numbers<[1], [0], [0], [1], [0, 0, 1, 1], [], []>} : vector<128x128xbf16>, vector<128x128xbf16>, vector<128x128xf32> -> vector<128x128xf32>
    %37 = arith.addf %36, %26 : vector<128x128xf32>
    %c0_22 = arith.constant 0 : index
    %c1_23 = arith.constant 1 : index
    %c0_24 = arith.constant 0 : index
    %c0_25 = arith.constant 0 : index
    %38 = vector.load %arg9[%c0_22, %c1_23, %c0_24, %c0_25] : memref<1x2x128x128xf32, #tpu.memory_space<vmem>>, vector<1x1x128x128xf32>
    %39 = vector.shape_cast %38 : vector<1x1x128x128xf32> to vector<128x128xf32>
    %40 = vector.shape_cast %37 : vector<128x128xf32> to vector<1x1x128x128xf32>
    tpu.vector_store %arg9[%c0_22, %c1_23, %c0_24, %c0_25], %40 {strides = array<i32>} : memref<1x2x128x128xf32, #tpu.memory_space<vmem>>, vector<1x1x128x128xf32>,
    return
  }
  func.func @transform_0(%arg0: i32, %arg1: i32, %arg2: i32) -> (i32, i32, i32) {
    %c0_i32 = arith.constant 0 : i32
    %c0_i32_0 = arith.constant 0 : i32
    %c0_i32_1 = arith.constant 0 : i32
    return %arg0, %c0_i32, %c0_i32_0 : i32, i32, i32
  }
  func.func @transform_1(%arg0: i32, %arg1: i32, %arg2: i32) -> (i32, i32, i32) {
    %c0_i32 = arith.constant 0 : i32
    %c0_i32_0 = arith.constant 0 : i32
    %c0_i32_1 = arith.constant 0 : i32
    return %arg1, %c0_i32, %c0_i32_0 : i32, i32, i32
  }
  func.func @transform_2(%arg0: i32, %arg1: i32, %arg2: i32) -> (i32, i32, i32) {
    %c0_i32 = arith.constant 0 : i32
    %c0_i32_0 = arith.constant 0 : i32
    %c0_i32_1 = arith.constant 0 : i32
    return %arg1, %c0_i32, %c0_i32_0 : i32, i32, i32
  }
  func.func @transform_3(%arg0: i32, %arg1: i32, %arg2: i32) -> (i32, i32, i32) {
    %c0_i32 = arith.constant 0 : i32
    %c0_i32_0 = arith.constant 0 : i32
    %c0_i32_1 = arith.constant 0 : i32
    return %arg0, %c0_i32, %c0_i32_0 : i32, i32, i32
  }
  func.func @transform_4(%arg0: i32, %arg1: i32, %arg2: i32) -> (i32, i32, i32) {
    %c0_i32 = arith.constant 0 : i32
    %c0_i32_0 = arith.constant 0 : i32
    %c0_i32_1 = arith.constant 0 : i32
    return %arg0, %c0_i32, %c0_i32_0 : i32, i32, i32
  }
  func.func @transform_5(%arg0: i32, %arg1: i32, %arg2: i32) -> (i32, i32) {
    %c0_i32 = arith.constant 0 : i32
    %c0_i32_0 = arith.constant 0 : i32
    %c0_i32_1 = arith.constant 0 : i32
    return %c0_i32, %c0_i32_0 : i32, i32
  }
  func.func @transform_6(%arg0: i32, %arg1: i32, %arg2: i32) -> (i32, i32, i32, i32) {
    %c0_i32 = arith.constant 0 : i32
    %c0_i32_0 = arith.constant 0 : i32
    return %arg0, %arg1, %arg2, %c0_i32 : i32, i32, i32, i32
  }
}

</mosaic_0001>

<llo_original>
// kernel: tpu_custom_call.1
$region0: #{tpu_custom_call.1}
  #allocation0 [shape = 'u32[]', space=smem, size = 0x4, offset = 0x4, fixed_abs, tag = 'smem constant byte address 0x4 - core index']
  #allocation1 [shape = 'u32[144,128]{1,0:T(1,128)}', space=vmem, size = 0x12000, scoped, tag = 'internal scratch']
  #allocation2 [shape = 'bf16[2,128,128]{2,1,0:T(8,128)(2,1)}', space=vmem, size = 0x10000, scoped, tag = 'scratch operand']
  #allocation3 [shape = 'bf16[2,1,128,128]{3,2,1,0:T(8,128)(2,1)}', space=vmem, size = 0x10000, scoped, tag = 'scratch operand']
  %s0 = inlined_call_operand.vmem [shape: bf16[2,128,32], index: 0, kind: input, shape index: {}]
  %s1 = inlined_call_operand.vmem [shape: bf16[2,32,32], index: 1, kind: input, shape index: {}]
  %s2 = inlined_call_operand.vmem [shape: f32[2,1,32], index: 2, kind: input, shape index: {}]
  %s3 = inlined_call_operand.vmem [shape: f32[2,128,1], index: 3, kind: input, shape index: {}]
  %s4 = inlined_call_operand.vmem [shape: f32[2,1,128], index: 4, kind: input, shape index: {}]
  %s5 = inlined_call_operand.vmem [shape: f32[128,16], index: 5, kind: input, shape index: {}]
  %s6 = inlined_call_operand.hbm [shape: f32[2,4,128,128], index: 6, kind: output, shape index: {}]
  %s7 = sld [smem:[#allocation0]]
  $region61: #{tpu_custom_call.1} parent=0
    _
  %s9 = ssub.s32 1, %s7
  %s10 = scalar_select 0, %s9, %s7
  $region1: #{tpu_custom_call.1} parent=0
    #allocation4 [shape = 'u8[262144]{0}', space=vmem, size = 0x40000, scoped, tag = 'output window, operand 0']
    #allocation5 [shape = 's32[2]{0}', space=sflag, size = 0x8, scoped, tag = 'scoped memory for tpu_custom_call.1']
    %11 = vsyncpa [#allocation5], 0
    %s12 = scalar_lea.sflag [#allocation5], 1
    %13 = vsyncpa %s12, 0
    loop: start=0, step=1, limit=6
    $region2: #{tpu_custom_call.1} parent=1 // loop_pre_header
      _
    $region3: #{tpu_custom_call.1} parent=1 // loop_header
      %s15 = sphi 0, %s19
      %p16 = scmp.ge.s32.totalorder %s15, 6
      %s22 = sphi 0, %s41
      %s23 = sphi 0, %s37
      %s24 = sphi 0, %s33
      %s25 = sphi 0, %s22
      %s26 = sphi 0, %s23
      %s27 = sphi 0, %s24
      %s28 = sphi 0, %s25
      %s29 = sphi 0, %s26
      %s30 = sphi 0, %s27
      %s44 = sphi 0, %s46
      %s47 = sphi 0, %s44
      %s48 = sphi 0, %s47
      %s64 = sphi 0, %s48
      %s70 = sphi 0, %s72
      %s73 = sphi 0, %s70
      %s74 = sphi 0, %s73
      %s90 = sphi 0, %s74
      %s96 = sphi 0, %s98
      %s99 = sphi 0, %s96
      %s100 = sphi 0, %s99
      %s116 = sphi 0, %s100
      %s122 = sphi 0, %s124
      %s125 = sphi 0, %s122
      %s126 = sphi 0, %s125
      %s142 = sphi 0, %s126
      %s148 = sphi 0, %s150
      %s151 = sphi 0, %s148
      %s152 = sphi 0, %s151
      %s168 = sphi 0, %s152
      %s172 = sphi 0, %s172
      %s174 = sphi 0, %s172
      %s175 = sphi 0, %s174
      %s189 = sphi 0, %s175
      %s199 = sphi 0, %s201
      %s202 = sphi 0, %s199
      %s203 = sphi 0, %s202
      %s219 = sphi 0, %s203
    $region4: #{tpu_custom_call.1} parent=1 // loop_header_branch
      %18 = sbr.rel (%p16) target = $region8
    $region5: #{tpu_custom_call.1} parent=1 // loop_body
      %s20 = ssub.s32 %s15, 1
      %s21 = ssub.s32 %s15, 2
      %s31 = sadd.s32 1, %s24
      %p32 = scmp.ge.s32.totalorder %s31, 1
      %s33 = scalar_select %p32, 0, %s31
      %s34 = sadd.s32 1, %s23
      %s35 = scalar_select %p32, %s34, %s23
      %p36 = scmp.ge.s32.totalorder %s35, 2
      %s37 = scalar_select %p36, 0, %s35
      %s38 = sadd.s32 1, %s22
      %s39 = scalar_select %p36, %s38, %s22
      %p40 = scmp.ge.s32.totalorder %s39, 2
      %s41 = scalar_select %p40, 0, %s39
      %s42 = ssub.s32 %s22, %s41
      %p43 = scmp.eq.s32.totalorder %s42, 0
      %s45 = sadd.s32 %s44, 1
      %s46 = scalar_select %p43, %s44, %s45
      %p49 = pneg %p43
      %p50 = scmp.eq.s32.totalorder %s15, 3
      %p51 = por %p49, %p50
      %p52 = scmp.ne.s32.totalorder %s44, %s47
      %p53 = scmp.eq.s32.totalorder %s15, 0
      %p54 = por %p52, %p53
      %p55 = scmp.ne.s32.totalorder %s44, %s47
      %p56 = scmp.eq.s32.totalorder %s20, 3
      %p57 = por %p55, %p56
      %p58 = scmp.ne.s32.totalorder %s47, %s48
      %p59 = scmp.eq.s32.totalorder %s20, 0
      %p60 = por %p58, %p59
      %p61 = scmp.ne.s32.totalorder %s47, %s48
      %p62 = scmp.eq.s32.totalorder %s21, 3
      %p63 = por %p61, %p62
      %p65 = scmp.ne.s32.totalorder %s48, %s64
      %p66 = scmp.eq.s32.totalorder %s21, 0
      %p67 = por %p65, %p66
      %s68 = ssub.s32 %s23, %s37
      %p69 = scmp.eq.s32.totalorder %s68, 0
      %s71 = sadd.s32 %s70, 1
      %s72 = scalar_select %p69, %s70, %s71
      %p75 = pneg %p69
      %p76 = scmp.eq.s32.totalorder %s15, 3
      %p77 = por %p75, %p76
      %p78 = scmp.ne.s32.totalorder %s70, %s73
      %p79 = scmp.eq.s32.totalorder %s15, 0
      %p80 = por %p78, %p79
      %p81 = scmp.ne.s32.totalorder %s70, %s73
      %p82 = scmp.eq.s32.totalorder %s20, 3
      %p83 = por %p81, %p82
      %p84 = scmp.ne.s32.totalorder %s73, %s74
      %p85 = scmp.eq.s32.totalorder %s20, 0
      %p86 = por %p84, %p85
      %p87 = scmp.ne.s32.totalorder %s73, %s74
      %p88 = scmp.eq.s32.totalorder %s21, 3
      %p89 = por %p87, %p88
      %p91 = scmp.ne.s32.totalorder %s74, %s90
      %p92 = scmp.eq.s32.totalorder %s21, 0
      %p93 = por %p91, %p92
      %s94 = ssub.s32 %s23, %s37
      %p95 = scmp.eq.s32.totalorder %s94, 0
      %s97 = sadd.s32 %s96, 1
      %s98 = scalar_select %p95, %s96, %s97
      %p101 = pneg %p95
      %p102 = scmp.eq.s32.totalorder %s15, 3
      %p103 = por %p101, %p102
      %p104 = scmp.ne.s32.totalorder %s96, %s99
      %p105 = scmp.eq.s32.totalorder %s15, 0
      %p106 = por %p104, %p105
      %p107 = scmp.ne.s32.totalorder %s96, %s99
      %p108 = scmp.eq.s32.totalorder %s20, 3
      %p109 = por %p107, %p108
      %p110 = scmp.ne.s32.totalorder %s99, %s100
      %p111 = scmp.eq.s32.totalorder %s20, 0
      %p112 = por %p110, %p111
      %p113 = scmp.ne.s32.totalorder %s99, %s100
      %p114 = scmp.eq.s32.totalorder %s21, 3
      %p115 = por %p113, %p114
      %p117 = scmp.ne.s32.totalorder %s100, %s116
      %p118 = scmp.eq.s32.totalorder %s21, 0
      %p119 = por %p117, %p118
      %s120 = ssub.s32 %s22, %s41
      %p121 = scmp.eq.s32.totalorder %s120, 0
      %s123 = sadd.s32 %s122, 1
      %s124 = scalar_select %p121, %s122, %s123
      %p127 = pneg %p121
      %p128 = scmp.eq.s32.totalorder %s15, 3
      %p129 = por %p127, %p128
      %p130 = scmp.ne.s32.totalorder %s122, %s125
      %p131 = scmp.eq.s32.totalorder %s15, 0
      %p132 = por %p130, %p131
      %p133 = scmp.ne.s32.totalorder %s122, %s125
      %p134 = scmp.eq.s32.totalorder %s20, 3
      %p135 = por %p133, %p134
      %p136 = scmp.ne.s32.totalorder %s125, %s126
      %p137 = scmp.eq.s32.totalorder %s20, 0
      %p138 = por %p136, %p137
      %p139 = scmp.ne.s32.totalorder %s125, %s126
      %p140 = scmp.eq.s32.totalorder %s21, 3
      %p141 = por %p139, %p140
      %p143 = scmp.ne.s32.totalorder %s126, %s142
      %p144 = scmp.eq.s32.totalorder %s21, 0
      %p145 = por %p143, %p144
      %s146 = ssub.s32 %s22, %s41
      %p147 = scmp.eq.s32.totalorder %s146, 0
      %s149 = sadd.s32 %s148, 1
      %s150 = scalar_select %p147, %s148, %s149
      %p153 = pneg %p147
      %p154 = scmp.eq.s32.totalorder %s15, 3
      %p155 = por %p153, %p154
      %p156 = scmp.ne.s32.totalorder %s148, %s151
      %p157 = scmp.eq.s32.totalorder %s15, 0
      %p158 = por %p156, %p157
      %p159 = scmp.ne.s32.totalorder %s148, %s151
      %p160 = scmp.eq.s32.totalorder %s20, 3
      %p161 = por %p159, %p160
      %p162 = scmp.ne.s32.totalorder %s151, %s152
      %p163 = scmp.eq.s32.totalorder %s20, 0
      %p164 = por %p162, %p163
      %p165 = scmp.ne.s32.totalorder %s151, %s152
      %p166 = scmp.eq.s32.totalorder %s21, 3
      %p167 = por %p165, %p166
      %p169 = scmp.ne.s32.totalorder %s152, %s168
      %p170 = scmp.eq.s32.totalorder %s21, 0
      %p171 = por %p169, %p170
      %s173 = sadd.s32 %s172, 1
      %p176 = scmp.eq.s32.totalorder %s15, 3
      %p177 = scmp.ne.s32.totalorder %s172, %s174
      %p178 = scmp.eq.s32.totalorder %s15, 0
      %p179 = por %p177, %p178
      %p180 = scmp.ne.s32.totalorder %s172, %s174
      %p181 = scmp.eq.s32.totalorder %s20, 3
      %p182 = por %p180, %p181
      %p183 = scmp.ne.s32.totalorder %s174, %s175
      %p184 = scmp.eq.s32.totalorder %s20, 0
      %p185 = por %p183, %p184
      %p186 = scmp.ne.s32.totalorder %s174, %s175
      %p187 = scmp.eq.s32.totalorder %s21, 3
      %p188 = por %p186, %p187
      %p190 = scmp.ne.s32.totalorder %s175, %s189
      %p191 = scmp.eq.s32.totalorder %s21, 0
      %p192 = por %p190, %p191
      %s193 = ssub.s32 %s22, %s41
      %s194 = ssub.s32 %s23, %s37
      %s195 = sor.u32 %s193, %s194
      %s196 = ssub.s32 %s24, %s33
      %s197 = sor.u32 %s195, %s196
      %p198 = scmp.eq.s32.totalorder %s197, 0
      %s200 = sadd.s32 %s199, 1
      %s201 = scalar_select %p198, %s199, %s200
      %p204 = pneg %p198
      %p205 = scmp.eq.s32.totalorder %s15, 3
      %p206 = por %p204, %p205
      %p207 = scmp.ne.s32.totalorder %s199, %s202
      %p208 = scmp.eq.s32.totalorder %s15, 0
      %p209 = por %p207, %p208
      %p210 = scmp.ne.s32.totalorder %s199, %s202
      %p211 = scmp.eq.s32.totalorder %s20, 3
      %p212 = por %p210, %p211
      %p213 = scmp.ne.s32.totalorder %s202, %s203
      %p214 = scmp.eq.s32.totalorder %s20, 0
      %p215 = por %p213, %p214
      %p216 = scmp.ne.s32.totalorder %s202, %s203
      %p217 = scmp.eq.s32.totalorder %s21, 3
      %p218 = por %p216, %p217
      %p220 = scmp.ne.s32.totalorder %s203, %s219
      %p221 = scmp.eq.s32.totalorder %s21, 0
      %p222 = por %p220, %p221
      %p223 = scmp.le.s32.totalorder 1, %s15
      %p224 = scmp.lt.s32.totalorder %s15, 5
      %p225 = pnand %p223, %p224
      %p226 = pneg %p225
      // Predicated region
      $region9: #{tpu_custom_call.1} parent=5 // pred_check
        _
      $region10: #{tpu_custom_call.1} parent=5 // pred_check_branch
        %228 = sbr.rel (%p225) target = $region12
      $region11: #{tpu_custom_call.1} parent=5 // pred_region
        %s229 = ssub.s32 %s15, 1
        // Predicated region
        $region13: #{tpu_custom_call.1} parent=11 // pred_check
          %p230 = pneg %p185
        $region14: #{tpu_custom_call.1} parent=11 // pred_check_branch
          %232 = sbr.rel (%p230) target = $region16
        $region15: #{tpu_custom_call.1} parent=11 // pred_region
          _
        $region16: #{tpu_custom_call.1} parent=11 // pred_fallthru
          _
      $region12: #{tpu_custom_call.1} parent=5 // pred_fallthru
        _
      %p233 = scmp.lt.s32.totalorder %s15, 4
      // Predicated region
      $region17: #{tpu_custom_call.1} parent=5 // pred_check
        %p234 = pneg %p233
      $region18: #{tpu_custom_call.1} parent=5 // pred_check_branch
        %236 = sbr.rel (%p234) target = $region20
      $region19: #{tpu_custom_call.1} parent=5 // pred_region
        // Predicated region
        $region21: #{tpu_custom_call.1} parent=19 // pred_check
          %p237 = pneg %p54
        $region22: #{tpu_custom_call.1} parent=19 // pred_check_branch
          %239 = sbr.rel (%p237) target = $region24
        $region23: #{tpu_custom_call.1} parent=19 // pred_region
          %p240 = scmp.lt.s32.totalorder %s22, 1
          %s241 = scalar_select %p240, %s22, 1
          %s242 = smul.addr %s241, 16
          %s243 = smul.addr %s242, 4
          %s244 = scalar_lea.vmem %s0, %s243
        $region24: #{tpu_custom_call.1} parent=19 // pred_fallthru
          _
        // Predicated region
        $region25: #{tpu_custom_call.1} parent=19 // pred_check
          %p245 = pneg %p80
        $region26: #{tpu_custom_call.1} parent=19 // pred_check_branch
          %247 = sbr.rel (%p245) target = $region28
        $region27: #{tpu_custom_call.1} parent=19 // pred_region
          %p248 = scmp.lt.s32.totalorder %s23, 1
          %s249 = scalar_select %p248, %s23, 1
          %s250 = smul.addr %s249, 4
          %s251 = smul.addr %s250, 4
          %s252 = scalar_lea.vmem %s1, %s251
        $region28: #{tpu_custom_call.1} parent=19 // pred_fallthru
          _
        // Predicated region
        $region29: #{tpu_custom_call.1} parent=19 // pred_check
          %p253 = pneg %p106
        $region30: #{tpu_custom_call.1} parent=19 // pred_check_branch
          %255 = sbr.rel (%p253) target = $region32
        $region31: #{tpu_custom_call.1} parent=19 // pred_region
          %p256 = scmp.lt.s32.totalorder %s23, 1
          %s257 = scalar_select %p256, %s23, 1
          %s258 = scalar_lea.vmem %s2, %s257
        $region32: #{tpu_custom_call.1} parent=19 // pred_fallthru
          _
        // Predicated region
        $region33: #{tpu_custom_call.1} parent=19 // pred_check
          %p259 = pneg %p132
        $region34: #{tpu_custom_call.1} parent=19 // pred_check_branch
          %261 = sbr.rel (%p259) target = $region36
        $region35: #{tpu_custom_call.1} parent=19 // pred_region
          %p262 = scmp.lt.s32.totalorder %s22, 1
          %s263 = scalar_select %p262, %s22, 1
          %s264 = smul.addr %s263, 16
          %s265 = smul.addr %s264, 8
          %s266 = scalar_lea.vmem %s3, %s265
        $region36: #{tpu_custom_call.1} parent=19 // pred_fallthru
          _
        // Predicated region
        $region37: #{tpu_custom_call.1} parent=19 // pred_check
          %p267 = pneg %p158
        $region38: #{tpu_custom_call.1} parent=19 // pred_check_branch
          %269 = sbr.rel (%p267) target = $region40
        $region39: #{tpu_custom_call.1} parent=19 // pred_region
          %p270 = scmp.lt.s32.totalorder %s22, 1
          %s271 = scalar_select %p270, %s22, 1
          %s272 = scalar_lea.vmem %s4, %s271
        $region40: #{tpu_custom_call.1} parent=19 // pred_fallthru
          _
      $region20: #{tpu_custom_call.1} parent=5 // pred_fallthru
        _
      %p273 = scmp.le.s32.totalorder 1, %s15
      %p274 = scmp.lt.s32.totalorder %s15, 5
      %p275 = pnand %p273, %p274
      %p276 = pneg %p275
      // Predicated region
      $region41: #{tpu_custom_call.1} parent=5 // pred_check
        _
      $region42: #{tpu_custom_call.1} parent=5 // pred_check_branch
        %278 = sbr.rel (%p275) target = $region44
      $region43: #{tpu_custom_call.1} parent=5 // pred_region
        %s279 = ssub.s32 %s15, 1
        %p280 = scmp.lt.s32.totalorder %s25, 1
        %s281 = scalar_select %p280, %s25, 1
        %s282 = smul.addr %s281, 16
        %s283 = smul.addr %s282, 4
        %s284 = scalar_lea.vmem %s0, %s283
        %p285 = pneg %p60
        %p286 = pneg %p57
        %p287 = scmp.lt.s32.totalorder %s26, 1
        %s288 = scalar_select %p287, %s26, 1
        %s289 = smul.addr %s288, 4
        %s290 = smul.addr %s289, 4
        %s291 = scalar_lea.vmem %s1, %s290
        %p292 = pneg %p86
        %p293 = pneg %p83
        %p294 = scmp.lt.s32.totalorder %s26, 1
        %s295 = scalar_select %p294, %s26, 1
        %s296 = scalar_lea.vmem %s2, %s295
        %p297 = pneg %p112
        %p298 = pneg %p109
        %p299 = scmp.lt.s32.totalorder %s25, 1
        %s300 = scalar_select %p299, %s25, 1
        %s301 = smul.addr %s300, 16
        %s302 = smul.addr %s301, 8
        %s303 = scalar_lea.vmem %s3, %s302
        %p304 = pneg %p138
        %p305 = pneg %p135
        %p306 = scmp.lt.s32.totalorder %s25, 1
        %s307 = scalar_select %p306, %s25, 1
        %s308 = scalar_lea.vmem %s4, %s307
        %p309 = pneg %p164
        %p310 = pneg %p161
        %p311 = pneg %p185
        %p312 = pneg %p182
        %p313 = pneg %p215
        %p314 = pneg %p212
        %s315 = sand.u32 %s202, 1
        %s316 = scalar_lea.sflag [#allocation5], %s315
        %s317 = sand.u32 %s202, 1
        %s318 = smul.addr %s317, 256
        %s319 = scalar_lea.vmem [#allocation4], %s318
        %p320 = scmp.lt.s32.totalorder %s25, 1
        %s321 = scalar_select %p320, %s25, 1
        %s322 = smul.addr %s321, 16
        %s323 = smul.addr %s322, 4
        %s324 = scalar_lea.vmem %s0, %s323
        %p325 = scmp.lt.s32.totalorder %s26, 1
        %s326 = scalar_select %p325, %s26, 1
        %s327 = smul.addr %s326, 4
        %s328 = smul.addr %s327, 4
        %s329 = scalar_lea.vmem %s1, %s328
        %p330 = scmp.lt.s32.totalorder %s26, 1
        %s331 = scalar_select %p330, %s26, 1
        %s332 = scalar_lea.vmem %s2, %s331
        %p333 = scmp.lt.s32.totalorder %s25, 1
        %s334 = scalar_select %p333, %s25, 1
        %s335 = smul.addr %s334, 16
        %s336 = smul.addr %s335, 8
        %s337 = scalar_lea.vmem %s3, %s336
        %p338 = scmp.lt.s32.totalorder %s25, 1
        %s339 = scalar_select %p338, %s25, 1
        %s340 = scalar_lea.vmem %s4, %s339
        %s341 = smul.u32 2, %s26
        %s342 = smul.u32 16, %s27
        %p344 = scmp.eq.s32.totalorder %s27, 0
        // Predicated region
        $region45: #{tpu_custom_call.1} parent=43 // pred_check
          %p345 = pneg %p344
        $region46: #{tpu_custom_call.1} parent=43 // pred_check_branch
          %347 = sbr.rel (%p345) target = $region48
        $region47: #{tpu_custom_call.1} parent=43 // pred_region
          %v348 = vld [vmem:[%s332] sm:$0x1]
          %v349 = vld [vmem:[%s324] sm:$0xf]
          %v350 = vld [vmem:[%s324 + $0x4] sm:$0xf]
          %v351 = vld [vmem:[%s324 + $0x8] sm:$0xf]
          %v352 = vld [vmem:[%s324 + $0xc] sm:$0xf]
          %v353 = vld [vmem:[%s324 + $0x10] sm:$0xf]
          %v354 = vld [vmem:[%s324 + $0x14] sm:$0xf]
          %v355 = vld [vmem:[%s324 + $0x18] sm:$0xf]
          %v356 = vld [vmem:[%s324 + $0x1c] sm:$0xf]
          %v357 = vld [vmem:[%s324 + $0x20] sm:$0xf]
          %v358 = vld [vmem:[%s324 + $0x24] sm:$0xf]
          %v359 = vld [vmem:[%s324 + $0x28] sm:$0xf]
          %v360 = vld [vmem:[%s324 + $0x2c] sm:$0xf]
          %v361 = vld [vmem:[%s324 + $0x30] sm:$0xf]
          %v362 = vld [vmem:[%s324 + $0x34] sm:$0xf]
          %v363 = vld [vmem:[%s324 + $0x38] sm:$0xf]
          %v364 = vld [vmem:[%s324 + $0x3c] sm:$0xf]
          %v365 = vld [vmem:[%s329] sm:$0xf]
          %v366 = vld [vmem:[%s329 + $0x4] sm:$0xf]
          %v367 = vld [vmem:[%s329 + $0x8] sm:$0xf]
          %v368 = vld [vmem:[%s329 + $0xc] sm:$0xf]
          %v370 = vlaneseq
          %v371 = vshrl.u32 %v370, 7
          %v372 = vsub.s32 0, %v371
          %v373 = vrot.slane %v348, %v372
          %v391 = vunpack.c.l.b16 %v349
          %v392 = vunpack.c.l.b16 %v350
          %v393 = vunpack.c.l.b16 %v351
          %v394 = vunpack.c.l.b16 %v352
          %v395 = vunpack.c.l.b16 %v353
          %v396 = vunpack.c.l.b16 %v354
          %v397 = vunpack.c.l.b16 %v355
          %v398 = vunpack.c.l.b16 %v356
          %v399 = vunpack.c.l.b16 %v357
          %v400 = vunpack.c.l.b16 %v358
          %v401 = vunpack.c.l.b16 %v359
          %v402 = vunpack.c.l.b16 %v360
          %v403 = vunpack.c.l.b16 %v361
          %v404 = vunpack.c.l.b16 %v362
          %v405 = vunpack.c.l.b16 %v363
          %v406 = vunpack.c.l.b16 %v364
          %v407 = vpack.c.b16 %v392, %v391
          %v408 = vpack.c.b16 %v394, %v393
          %v409 = vpack.c.b16 %v396, %v395
          %v410 = vpack.c.b16 %v398, %v397
          %v411 = vpack.c.b16 %v400, %v399
          %v412 = vpack.c.b16 %v402, %v401
          %v413 = vpack.c.b16 %v404, %v403
          %v414 = vpack.c.b16 %v406, %v405
          %v419 = vunpack.c.l.b16 %v365
          %v420 = vunpack.c.l.b16 %v366
          %v421 = vunpack.c.l.b16 %v367
          %v422 = vunpack.c.l.b16 %v368
          %v423 = vpack.c.b16 %v420, %v419
          %v424 = vpack.c.b16 %v422, %v421
          %vm427 = vcmask 261120
          %v429 = vsel %vm427, %v407, 0
          %v432 = vsel %vm427, %v408, 0
          %v435 = vsel %vm427, %v409, 0
          %v438 = vsel %vm427, %v410, 0
          %v441 = vsel %vm427, %v411, 0
          %v444 = vsel %vm427, %v412, 0
          %v447 = vsel %vm427, %v413, 0
          %v450 = vsel %vm427, %v414, 0
          %452 = vmatprep.subr.bf16.mxu0 0
          %453 = vmatpush1.bf16.msra.mxu0 0
          %454 = vmatprep.subr.bf16.mxu0 0
          %455 = vmatpush1.bf16.msra.mxu0 0
          %456 = vmatprep.subr.bf16.mxu0 0
          %457 = vmatpush1.bf16.msra.mxu0 0
          %458 = vmatprep.subr.bf16.mxu0 0
          %459 = vmatpush1.bf16.msra.mxu0 0
          %460 = vmatprep.subr.bf16.mxu0 0
          %461 = vmatpush1.bf16.msra.mxu0 0
          %462 = vmatprep.subr.bf16.mxu0 0
          %463 = vmatpush1.bf16.msra.mxu0 0
          %464 = vmatprep.subr.bf16.mxu0 0
          %465 = vmatpush1.bf16.msra.mxu0 %v424
          %466 = vmatprep.subr.bf16.mxu0 0
          %467 = vmatpush1.bf16.msra.mxu0 %v423
          %468 = vmatprep.subr.bf16.mxu0 0
          %469 = vmatpush2.bf16.msra.mxu0 0
          %470 = vmatprep.subr.bf16.mxu0 0
          %471 = vmatpush2.bf16.msra.mxu0 0
          %472 = vmatprep.subr.bf16.mxu0 0
          %473 = vmatpush2.bf16.msra.mxu0 0
          %474 = vmatprep.subr.bf16.mxu0 0
          %475 = vmatpush2.bf16.msra.mxu0 0
          %476 = vmatprep.subr.bf16.mxu0 0
          %477 = vmatpush2.bf16.msra.mxu0 0
          %478 = vmatprep.subr.bf16.mxu0 0
          %479 = vmatpush2.bf16.msra.mxu0 0
          %480 = vmatprep.subr.bf16.mxu0 0
          %481 = vmatpush2.bf16.msra.mxu0 0
          %482 = vmatprep.subr.bf16.mxu0 0
          %483 = vmatpush2.bf16.msra.mxu0 0
          %484 = vmatprep.mubr.bf16.mxu0 0
          %485 = vmatmul.mubr.bf16.gmra.mxu0 %v429
          %v486 = vpop.f32.mrf.mxu0
          %v487 = vadd.f32 %v373, %v486
          %v488 = vpop.f32.mrf.mxu0
          %v489 = vpop.f32.mrf.mxu0
          %v490 = vadd.f32 %v373, %v489
          %v491 = vpop.f32.mrf.mxu0
          %492 = vmatprep.mubr.bf16.mxu0 0
          %493 = vmatmul.mubr.bf16.gmra.mxu0 %v432
          %v494 = vpop.f32.mrf.mxu0
          %v495 = vadd.f32 %v373, %v494
          %v496 = vpop.f32.mrf.mxu0
          %v497 = vpop.f32.mrf.mxu0
          %v498 = vadd.f32 %v373, %v497
          %v499 = vpop.f32.mrf.mxu0
          %500 = vmatprep.mubr.bf16.mxu0 0
          %501 = vmatmul.mubr.bf16.gmra.mxu0 %v435
          %v502 = vpop.f32.mrf.mxu0
          %v503 = vadd.f32 %v373, %v502
          %v504 = vpop.f32.mrf.mxu0
          %v505 = vpop.f32.mrf.mxu0
          %v506 = vadd.f32 %v373, %v505
          %v507 = vpop.f32.mrf.mxu0
          %508 = vmatprep.mubr.bf16.mxu0 0
          %509 = vmatmul.mubr.bf16.gmra.mxu0 %v438
          %v510 = vpop.f32.mrf.mxu0
          %v511 = vadd.f32 %v373, %v510
          %v512 = vpop.f32.mrf.mxu0
          %v513 = vpop.f32.mrf.mxu0
          %v514 = vadd.f32 %v373, %v513
          %v515 = vpop.f32.mrf.mxu0
          %516 = vmatprep.mubr.bf16.mxu0 0
          %517 = vmatmul.mubr.bf16.gmra.mxu0 %v441
          %v518 = vpop.f32.mrf.mxu0
          %v519 = vadd.f32 %v373, %v518
          %v520 = vpop.f32.mrf.mxu0
          %v521 = vpop.f32.mrf.mxu0
          %v522 = vadd.f32 %v373, %v521
          %v523 = vpop.f32.mrf.mxu0
          %524 = vmatprep.mubr.bf16.mxu0 0
          %525 = vmatmul.mubr.bf16.gmra.mxu0 %v444
          %v526 = vpop.f32.mrf.mxu0
          %v527 = vadd.f32 %v373, %v526
          %v528 = vpop.f32.mrf.mxu0
          %v529 = vpop.f32.mrf.mxu0
          %v530 = vadd.f32 %v373, %v529
          %v531 = vpop.f32.mrf.mxu0
          %532 = vmatprep.mubr.bf16.mxu0 0
          %533 = vmatmul.mubr.bf16.gmra.mxu0 %v447
          %v534 = vpop.f32.mrf.mxu0
          %v535 = vadd.f32 %v373, %v534
          %v536 = vpop.f32.mrf.mxu0
          %v537 = vpop.f32.mrf.mxu0
          %v538 = vadd.f32 %v373, %v537
          %v539 = vpop.f32.mrf.mxu0
          %540 = vmatprep.mubr.bf16.mxu0 0
          %541 = vmatmul.mubr.bf16.gmra.mxu0 %v450
          %v542 = vpop.f32.mrf.mxu0
          %v543 = vadd.f32 %v373, %v542
          %v544 = vpop.f32.mrf.mxu0
          %v545 = vpop.f32.mrf.mxu0
          %v546 = vadd.f32 %v373, %v545
          %v547 = vpop.f32.mrf.mxu0
          %548 = vdwg.mxu0
          %v549 = vld [vmem:[%s5] sm:$0xff]
          %v550 = vld [vmem:[%s5 + $0x8] sm:$0xff]
          %v551 = vld [vmem:[%s5 + $0x10] sm:$0xff]
          %v552 = vld [vmem:[%s5 + $0x18] sm:$0xff]
          %v553 = vld [vmem:[%s5 + $0x20] sm:$0xff]
          %v554 = vld [vmem:[%s5 + $0x28] sm:$0xff]
          %v555 = vld [vmem:[%s5 + $0x30] sm:$0xff]
          %v556 = vld [vmem:[%s5 + $0x38] sm:$0xff]
          %v557 = vld [vmem:[%s5 + $0x40] sm:$0xff]
          %v558 = vld [vmem:[%s5 + $0x48] sm:$0xff]
          %v559 = vld [vmem:[%s5 + $0x50] sm:$0xff]
          %v560 = vld [vmem:[%s5 + $0x58] sm:$0xff]
          %v561 = vld [vmem:[%s5 + $0x60] sm:$0xff]
          %v562 = vld [vmem:[%s5 + $0x68] sm:$0xff]
          %v563 = vld [vmem:[%s5 + $0x70] sm:$0xff]
          %v564 = vld [vmem:[%s5 + $0x78] sm:$0xff]
          %v565 = vld [vmem:[%s337] sm:$0xff]
          %v566 = vld [vmem:[%s337 + $0x8] sm:$0xff]
          %v567 = vld [vmem:[%s337 + $0x10] sm:$0xff]
          %v568 = vld [vmem:[%s337 + $0x18] sm:$0xff]
          %v569 = vld [vmem:[%s337 + $0x20] sm:$0xff]
          %v570 = vld [vmem:[%s337 + $0x28] sm:$0xff]
          %v571 = vld [vmem:[%s337 + $0x30] sm:$0xff]
          %v572 = vld [vmem:[%s337 + $0x38] sm:$0xff]
          %v573 = vld [vmem:[%s337 + $0x40] sm:$0xff]
          %v574 = vld [vmem:[%s337 + $0x48] sm:$0xff]
          %v575 = vld [vmem:[%s337 + $0x50] sm:$0xff]
          %v576 = vld [vmem:[%s337 + $0x58] sm:$0xff]
          %v577 = vld [vmem:[%s337 + $0x60] sm:$0xff]
          %v578 = vld [vmem:[%s337 + $0x68] sm:$0xff]
          %v579 = vld [vmem:[%s337 + $0x70] sm:$0xff]
          %v580 = vld [vmem:[%s337 + $0x78] sm:$0xff]
          %v581 = vmul.f32 %v487, %v549
          %v582 = vmul.f32 %v490, %v550
          %v583 = vmul.f32 %v495, %v551
          %v584 = vmul.f32 %v498, %v552
          %v585 = vmul.f32 %v503, %v553
          %v586 = vmul.f32 %v506, %v554
          %v587 = vmul.f32 %v511, %v555
          %v588 = vmul.f32 %v514, %v556
          %v589 = vmul.f32 %v519, %v557
          %v590 = vmul.f32 %v522, %v558
          %v591 = vmul.f32 %v527, %v559
          %v592 = vmul.f32 %v530, %v560
          %v593 = vmul.f32 %v535, %v561
          %v594 = vmul.f32 %v538, %v562
          %v595 = vmul.f32 %v543, %v563
          %v596 = vmul.f32 %v546, %v564
          %613 = vrot.lane.b32.xlu0 %v487, 124
          %v614 = vpop.permute.xlu0 %613
          %615 = vrot.lane.b32.xlu0 %v490, 124
          %v616 = vpop.permute.xlu0 %615
          %617 = vrot.lane.b32.xlu0 %v495, 124
          %v618 = vpop.permute.xlu0 %617
          %619 = vrot.lane.b32.xlu0 %v498, 124
          %v620 = vpop.permute.xlu0 %619
          %621 = vrot.lane.b32.xlu0 %v503, 124
          %v622 = vpop.permute.xlu0 %621
          %623 = vrot.lane.b32.xlu0 %v506, 124
          %v624 = vpop.permute.xlu0 %623
          %625 = vrot.lane.b32.xlu0 %v511, 124
          %v626 = vpop.permute.xlu0 %625
          %627 = vrot.lane.b32.xlu0 %v514, 124
          %v628 = vpop.permute.xlu0 %627
          %629 = vrot.lane.b32.xlu0 %v519, 124
          %v630 = vpop.permute.xlu0 %629
          %631 = vrot.lane.b32.xlu0 %v522, 124
          %v632 = vpop.permute.xlu0 %631
          %633 = vrot.lane.b32.xlu0 %v527, 124
          %v634 = vpop.permute.xlu0 %633
          %635 = vrot.lane.b32.xlu0 %v530, 124
          %v636 = vpop.permute.xlu0 %635
          %637 = vrot.lane.b32.xlu0 %v535, 124
          %v638 = vpop.permute.xlu0 %637
          %639 = vrot.lane.b32.xlu0 %v538, 124
          %v640 = vpop.permute.xlu0 %639
          %641 = vrot.lane.b32.xlu0 %v543, 124
          %v642 = vpop.permute.xlu0 %641
          %643 = vrot.lane.b32.xlu0 %v546, 124
          %v644 = vpop.permute.xlu0 %643
          %661 = vrot.lane.b32.xlu0 %v487, 4
          %v662 = vpop.permute.xlu0 %661
          %663 = vrot.lane.b32.xlu0 %v490, 4
          %v664 = vpop.permute.xlu0 %663
          %665 = vrot.lane.b32.xlu0 %v495, 4
          %v666 = vpop.permute.xlu0 %665
          %667 = vrot.lane.b32.xlu0 %v498, 4
          %v668 = vpop.permute.xlu0 %667
          %669 = vrot.lane.b32.xlu0 %v503, 4
          %v670 = vpop.permute.xlu0 %669
          %671 = vrot.lane.b32.xlu0 %v506, 4
          %v672 = vpop.permute.xlu0 %671
          %673 = vrot.lane.b32.xlu0 %v511, 4
          %v674 = vpop.permute.xlu0 %673
          %675 = vrot.lane.b32.xlu0 %v514, 4
          %v676 = vpop.permute.xlu0 %675
          %677 = vrot.lane.b32.xlu0 %v519, 4
          %v678 = vpop.permute.xlu0 %677
          %679 = vrot.lane.b32.xlu0 %v522, 4
          %v680 = vpop.permute.xlu0 %679
          %681 = vrot.lane.b32.xlu0 %v527, 4
          %v682 = vpop.permute.xlu0 %681
          %683 = vrot.lane.b32.xlu0 %v530, 4
          %v684 = vpop.permute.xlu0 %683
          %685 = vrot.lane.b32.xlu0 %v535, 4
          %v686 = vpop.permute.xlu0 %685
          %687 = vrot.lane.b32.xlu0 %v538, 4
          %v688 = vpop.permute.xlu0 %687
          %689 = vrot.lane.b32.xlu0 %v543, 4
          %v690 = vpop.permute.xlu0 %689
          %691 = vrot.lane.b32.xlu0 %v546, 4
          %v692 = vpop.permute.xlu0 %691
          %vm709 = vcmask 31744
          %v710 = vsel %vm709, %v614, %v662
          %v711 = vsel %vm709, %v616, %v664
          %v712 = vsel %vm709, %v618, %v666
          %v713 = vsel %vm709, %v620, %v668
          %v714 = vsel %vm709, %v622, %v670
          %v715 = vsel %vm709, %v624, %v672
          %v716 = vsel %vm709, %v626, %v674
          %v717 = vsel %vm709, %v628, %v676
          %v718 = vsel %vm709, %v630, %v678
          %v719 = vsel %vm709, %v632, %v680
          %v720 = vsel %vm709, %v634, %v682
          %v721 = vsel %vm709, %v636, %v684
          %v722 = vsel %vm709, %v638, %v686
          %v723 = vsel %vm709, %v640, %v688
          %v724 = vsel %vm709, %v642, %v690
          %v725 = vsel %vm709, %v644, %v692
          %742 = vrot.lane.b32.xlu0 %v549, 120
          %v743 = vpop.permute.xlu0 %742
          %744 = vrot.lane.b32.xlu0 %v550, 120
          %v745 = vpop.permute.xlu0 %744
          %746 = vrot.lane.b32.xlu0 %v551, 120
          %v747 = vpop.permute.xlu0 %746
          %748 = vrot.lane.b32.xlu0 %v552, 120
          %v749 = vpop.permute.xlu0 %748
          %750 = vrot.lane.b32.xlu0 %v553, 120
          %v751 = vpop.permute.xlu0 %750
          %752 = vrot.lane.b32.xlu0 %v554, 120
          %v753 = vpop.permute.xlu0 %752
          %754 = vrot.lane.b32.xlu0 %v555, 120
          %v755 = vpop.permute.xlu0 %754
          %756 = vrot.lane.b32.xlu0 %v556, 120
          %v757 = vpop.permute.xlu0 %756
          %758 = vrot.lane.b32.xlu0 %v557, 120
          %v759 = vpop.permute.xlu0 %758
          %760 = vrot.lane.b32.xlu0 %v558, 120
          %v761 = vpop.permute.xlu0 %760
          %762 = vrot.lane.b32.xlu0 %v559, 120
          %v763 = vpop.permute.xlu0 %762
          %764 = vrot.lane.b32.xlu0 %v560, 120
          %v765 = vpop.permute.xlu0 %764
          %766 = vrot.lane.b32.xlu0 %v561, 120
          %v767 = vpop.permute.xlu0 %766
          %768 = vrot.lane.b32.xlu0 %v562, 120
          %v769 = vpop.permute.xlu0 %768
          %770 = vrot.lane.b32.xlu0 %v563, 120
          %v771 = vpop.permute.xlu0 %770
          %772 = vrot.lane.b32.xlu0 %v564, 120
          %v773 = vpop.permute.xlu0 %772
          %v790 = vmul.f32 %v710, %v743
          %v791 = vmul.f32 %v711, %v745
          %v792 = vmul.f32 %v712, %v747
          %v793 = vmul.f32 %v713, %v749
          %v794 = vmul.f32 %v714, %v751
          %v795 = vmul.f32 %v715, %v753
          %v796 = vmul.f32 %v716, %v755
          %v797 = vmul.f32 %v717, %v757
          %v798 = vmul.f32 %v718, %v759
          %v799 = vmul.f32 %v719, %v761
          %v800 = vmul.f32 %v720, %v763
          %v801 = vmul.f32 %v721, %v765
          %v802 = vmul.f32 %v722, %v767
          %v803 = vmul.f32 %v723, %v769
          %v804 = vmul.f32 %v724, %v771
          %v805 = vmul.f32 %v725, %v773
          %v806 = vadd.f32 %v581, %v790
          %v807 = vadd.f32 %v582, %v791
          %v808 = vadd.f32 %v583, %v792
          %v809 = vadd.f32 %v584, %v793
          %v810 = vadd.f32 %v585, %v794
          %v811 = vadd.f32 %v586, %v795
          %v812 = vadd.f32 %v587, %v796
          %v813 = vadd.f32 %v588, %v797
          %v814 = vadd.f32 %v589, %v798
          %v815 = vadd.f32 %v590, %v799
          %v816 = vadd.f32 %v591, %v800
          %v817 = vadd.f32 %v592, %v801
          %v818 = vadd.f32 %v593, %v802
          %v819 = vadd.f32 %v594, %v803
          %v820 = vadd.f32 %v595, %v804
          %v821 = vadd.f32 %v596, %v805
          %822 = vrot.lane.b32.xlu0 %v549, 8
          %v823 = vpop.permute.xlu0 %822
          %824 = vrot.lane.b32.xlu0 %v550, 8
          %v825 = vpop.permute.xlu0 %824
          %826 = vrot.lane.b32.xlu0 %v551, 8
          %v827 = vpop.permute.xlu0 %826
          %828 = vrot.lane.b32.xlu0 %v552, 8
          %v829 = vpop.permute.xlu0 %828
          %830 = vrot.lane.b32.xlu0 %v553, 8
          %v831 = vpop.permute.xlu0 %830
          %832 = vrot.lane.b32.xlu0 %v554, 8
          %v833 = vpop.permute.xlu0 %832
          %834 = vrot.lane.b32.xlu0 %v555, 8
          %v835 = vpop.permute.xlu0 %834
          %836 = vrot.lane.b32.xlu0 %v556, 8
          %v837 = vpop.permute.xlu0 %836
          %838 = vrot.lane.b32.xlu0 %v557, 8
          %v839 = vpop.permute.xlu0 %838
          %840 = vrot.lane.b32.xlu0 %v558, 8
          %v841 = vpop.permute.xlu0 %840
          %842 = vrot.lane.b32.xlu0 %v559, 8
          %v843 = vpop.permute.xlu0 %842
          %844 = vrot.lane.b32.xlu0 %v560, 8
          %v845 = vpop.permute.xlu0 %844
          %846 = vrot.lane.b32.xlu0 %v561, 8
          %v847 = vpop.permute.xlu0 %846
          %848 = vrot.lane.b32.xlu0 %v562, 8
          %v849 = vpop.permute.xlu0 %848
          %850 = vrot.lane.b32.xlu0 %v563, 8
          %v851 = vpop.permute.xlu0 %850
          %852 = vrot.lane.b32.xlu0 %v564, 8
          %v853 = vpop.permute.xlu0 %852
          %v870 = vmul.f32 %v487, %v823
          %v871 = vmul.f32 %v490, %v825
          %v872 = vmul.f32 %v495, %v827
          %v873 = vmul.f32 %v498, %v829
          %v874 = vmul.f32 %v503, %v831
          %v875 = vmul.f32 %v506, %v833
          %v876 = vmul.f32 %v511, %v835
          %v877 = vmul.f32 %v514, %v837
          %v878 = vmul.f32 %v519, %v839
          %v879 = vmul.f32 %v522, %v841
          %v880 = vmul.f32 %v527, %v843
          %v881 = vmul.f32 %v530, %v845
          %v882 = vmul.f32 %v535, %v847
          %v883 = vmul.f32 %v538, %v849
          %v884 = vmul.f32 %v543, %v851
          %v885 = vmul.f32 %v546, %v853
          %886 = vrot.lane.b32.xlu0 %v487, 116
          %v887 = vpop.permute.xlu0 %886
          %888 = vrot.lane.b32.xlu0 %v490, 116
          %v889 = vpop.permute.xlu0 %888
          %890 = vrot.lane.b32.xlu0 %v495, 116
          %v891 = vpop.permute.xlu0 %890
          %892 = vrot.lane.b32.xlu0 %v498, 116
          %v893 = vpop.permute.xlu0 %892
          %894 = vrot.lane.b32.xlu0 %v503, 116
          %v895 = vpop.permute.xlu0 %894
          %896 = vrot.lane.b32.xlu0 %v506, 116
          %v897 = vpop.permute.xlu0 %896
          %898 = vrot.lane.b32.xlu0 %v511, 116
          %v899 = vpop.permute.xlu0 %898
          %900 = vrot.lane.b32.xlu0 %v514, 116
          %v901 = vpop.permute.xlu0 %900
          %902 = vrot.lane.b32.xlu0 %v519, 116
          %v903 = vpop.permute.xlu0 %902
          %904 = vrot.lane.b32.xlu0 %v522, 116
          %v905 = vpop.permute.xlu0 %904
          %906 = vrot.lane.b32.xlu0 %v527, 116
          %v907 = vpop.permute.xlu0 %906
          %908 = vrot.lane.b32.xlu0 %v530, 116
          %v909 = vpop.permute.xlu0 %908
          %910 = vrot.lane.b32.xlu0 %v535, 116
          %v911 = vpop.permute.xlu0 %910
          %912 = vrot.lane.b32.xlu0 %v538, 116
          %v913 = vpop.permute.xlu0 %912
          %914 = vrot.lane.b32.xlu0 %v543, 116
          %v915 = vpop.permute.xlu0 %914
          %916 = vrot.lane.b32.xlu0 %v546, 116
          %v917 = vpop.permute.xlu0 %916
          %v934 = vsel %vm709, %v887, %v614
          %v935 = vsel %vm709, %v889, %v616
          %v936 = vsel %vm709, %v891, %v618
          %v937 = vsel %vm709, %v893, %v620
          %v938 = vsel %vm709, %v895, %v622
          %v939 = vsel %vm709, %v897, %v624
          %v940 = vsel %vm709, %v899, %v626
          %v941 = vsel %vm709, %v901, %v628
          %v942 = vsel %vm709, %v903, %v630
          %v943 = vsel %vm709, %v905, %v632
          %v944 = vsel %vm709, %v907, %v634
          %v945 = vsel %vm709, %v909, %v636
          %v946 = vsel %vm709, %v911, %v638
          %v947 = vsel %vm709, %v913, %v640
          %v948 = vsel %vm709, %v915, %v642
          %v949 = vsel %vm709, %v917, %v644
          %v950 = vmul.f32 %v934, %v743
          %v951 = vmul.f32 %v935, %v745
          %v952 = vmul.f32 %v936, %v747
          %v953 = vmul.f32 %v937, %v749
          %v954 = vmul.f32 %v938, %v751
          %v955 = vmul.f32 %v939, %v753
          %v956 = vmul.f32 %v940, %v755
          %v957 = vmul.f32 %v941, %v757
          %v958 = vmul.f32 %v942, %v759
          %v959 = vmul.f32 %v943, %v761
          %v960 = vmul.f32 %v944, %v763
          %v961 = vmul.f32 %v945, %v765
          %v962 = vmul.f32 %v946, %v767
          %v963 = vmul.f32 %v947, %v769
          %v964 = vmul.f32 %v948, %v771
          %v965 = vmul.f32 %v949, %v773
          %982 = vrot.lane.b32.xlu0 %v950, 8
          %v983 = vpop.permute.xlu0 %982
          %984 = vrot.lane.b32.xlu0 %v951, 8
          %v985 = vpop.permute.xlu0 %984
          %986 = vrot.lane.b32.xlu0 %v952, 8
          %v987 = vpop.permute.xlu0 %986
          %988 = vrot.lane.b32.xlu0 %v953, 8
          %v989 = vpop.permute.xlu0 %988
          %990 = vrot.lane.b32.xlu0 %v954, 8
          %v991 = vpop.permute.xlu0 %990
          %992 = vrot.lane.b32.xlu0 %v955, 8
          %v993 = vpop.permute.xlu0 %992
          %994 = vrot.lane.b32.xlu0 %v956, 8
          %v995 = vpop.permute.xlu0 %994
          %996 = vrot.lane.b32.xlu0 %v957, 8
          %v997 = vpop.permute.xlu0 %996
          %998 = vrot.lane.b32.xlu0 %v958, 8
          %v999 = vpop.permute.xlu0 %998
          %1000 = vrot.lane.b32.xlu0 %v959, 8
          %v1001 = vpop.permute.xlu0 %1000
          %1002 = vrot.lane.b32.xlu0 %v960, 8
          %v1003 = vpop.permute.xlu0 %1002
          %1004 = vrot.lane.b32.xlu0 %v961, 8
          %v1005 = vpop.permute.xlu0 %1004
          %1006 = vrot.lane.b32.xlu0 %v962, 8
          %v1007 = vpop.permute.xlu0 %1006
          %1008 = vrot.lane.b32.xlu0 %v963, 8
          %v1009 = vpop.permute.xlu0 %1008
          %1010 = vrot.lane.b32.xlu0 %v964, 8
          %v1011 = vpop.permute.xlu0 %1010
          %1012 = vrot.lane.b32.xlu0 %v965, 8
          %v1013 = vpop.permute.xlu0 %1012
          %v1030 = vadd.f32 %v870, %v983
          %v1031 = vadd.f32 %v871, %v985
          %v1032 = vadd.f32 %v872, %v987
          %v1033 = vadd.f32 %v873, %v989
          %v1034 = vadd.f32 %v874, %v991
          %v1035 = vadd.f32 %v875, %v993
          %v1036 = vadd.f32 %v876, %v995
          %v1037 = vadd.f32 %v877, %v997
          %v1038 = vadd.f32 %v878, %v999
          %v1039 = vadd.f32 %v879, %v1001
          %v1040 = vadd.f32 %v880, %v1003
          %v1041 = vadd.f32 %v881, %v1005
          %v1042 = vadd.f32 %v882, %v1007
          %v1043 = vadd.f32 %v883, %v1009
          %v1044 = vadd.f32 %v884, %v1011
          %v1045 = vadd.f32 %v885, %v1013
          %1047 = vset.pattern.permute.xlu0 0
          %1048 = vperm.xlu0 %1047, %v565
          %v1049 = vpop.permute.xlu0 %1048
          %1052 = vset.pattern.permute.xlu0 0
          %1053 = vperm.xlu0 %1052, %v566
          %v1054 = vpop.permute.xlu0 %1053
          %1057 = vset.pattern.permute.xlu0 0
          %1058 = vperm.xlu0 %1057, %v567
          %v1059 = vpop.permute.xlu0 %1058
          %1062 = vset.pattern.permute.xlu0 0
          %1063 = vperm.xlu0 %1062, %v568
          %v1064 = vpop.permute.xlu0 %1063
          %1067 = vset.pattern.permute.xlu0 0
          %1068 = vperm.xlu0 %1067, %v569
          %v1069 = vpop.permute.xlu0 %1068
          %1072 = vset.pattern.permute.xlu0 0
          %1073 = vperm.xlu0 %1072, %v570
          %v1074 = vpop.permute.xlu0 %1073
          %1077 = vset.pattern.permute.xlu0 0
          %1078 = vperm.xlu0 %1077, %v571
          %v1079 = vpop.permute.xlu0 %1078
          %1082 = vset.pattern.permute.xlu0 0
          %1083 = vperm.xlu0 %1082, %v572
          %v1084 = vpop.permute.xlu0 %1083
          %1087 = vset.pattern.permute.xlu0 0
          %1088 = vperm.xlu0 %1087, %v573
          %v1089 = vpop.permute.xlu0 %1088
          %1092 = vset.pattern.permute.xlu0 0
          %1093 = vperm.xlu0 %1092, %v574
          %v1094 = vpop.permute.xlu0 %1093
          %1097 = vset.pattern.permute.xlu0 0
          %1098 = vperm.xlu0 %1097, %v575
          %v1099 = vpop.permute.xlu0 %1098
          %1102 = vset.pattern.permute.xlu0 0
          %1103 = vperm.xlu0 %1102, %v576
          %v1104 = vpop.permute.xlu0 %1103
          %1107 = vset.pattern.permute.xlu0 0
          %1108 = vperm.xlu0 %1107, %v577
          %v1109 = vpop.permute.xlu0 %1108
          %1112 = vset.pattern.permute.xlu0 0
          %1113 = vperm.xlu0 %1112, %v578
          %v1114 = vpop.permute.xlu0 %1113
          %1117 = vset.pattern.permute.xlu0 0
          %1118 = vperm.xlu0 %1117, %v579
          %v1119 = vpop.permute.xlu0 %1118
          %1122 = vset.pattern.permute.xlu0 0
          %1123 = vperm.xlu0 %1122, %v580
          %v1124 = vpop.permute.xlu0 %1123
          %v1126 = vmul.f32 %v1030, %v1049
          %v1127 = vmul.f32 %v1031, %v1054
          %v1128 = vmul.f32 %v1032, %v1059
          %v1129 = vmul.f32 %v1033, %v1064
          %v1130 = vmul.f32 %v1034, %v1069
          %v1131 = vmul.f32 %v1035, %v1074
          %v1132 = vmul.f32 %v1036, %v1079
          %v1133 = vmul.f32 %v1037, %v1084
          %v1134 = vmul.f32 %v1038, %v1089
          %v1135 = vmul.f32 %v1039, %v1094
          %v1136 = vmul.f32 %v1040, %v1099
          %v1137 = vmul.f32 %v1041, %v1104
          %v1138 = vmul.f32 %v1042, %v1109
          %v1139 = vmul.f32 %v1043, %v1114
          %v1140 = vmul.f32 %v1044, %v1119
          %v1141 = vmul.f32 %v1045, %v1124
          %vm1142 = vcmask 64512
          %v1143 = vsel %vm1142, %v806, 0.0
          %v1144 = vsel %vm1142, %v807, 0.0
          %v1145 = vsel %vm1142, %v808, 0.0
          %v1146 = vsel %vm1142, %v809, 0.0
          %v1147 = vsel %vm1142, %v810, 0.0
          %v1148 = vsel %vm1142, %v811, 0.0
          %v1149 = vsel %vm1142, %v812, 0.0
          %v1150 = vsel %vm1142, %v813, 0.0
          %v1151 = vsel %vm1142, %v814, 0.0
          %v1152 = vsel %vm1142, %v815, 0.0
          %v1153 = vsel %vm1142, %v816, 0.0
          %v1154 = vsel %vm1142, %v817, 0.0
          %v1155 = vsel %vm1142, %v818, 0.0
          %v1156 = vsel %vm1142, %v819, 0.0
          %v1157 = vsel %vm1142, %v820, 0.0
          %v1158 = vsel %vm1142, %v821, 0.0
          %1175 = vrot.lane.b32.xlu0 %v1126, 120
          %v1176 = vpop.permute.xlu0 %1175
          %1177 = vrot.lane.b32.xlu0 %v1127, 120
          %v1178 = vpop.permute.xlu0 %1177
          %1179 = vrot.lane.b32.xlu0 %v1128, 120
          %v1180 = vpop.permute.xlu0 %1179
          %1181 = vrot.lane.b32.xlu0 %v1129, 120
          %v1182 = vpop.permute.xlu0 %1181
          %1183 = vrot.lane.b32.xlu0 %v1130, 120
          %v1184 = vpop.permute.xlu0 %1183
          %1185 = vrot.lane.b32.xlu0 %v1131, 120
          %v1186 = vpop.permute.xlu0 %1185
          %1187 = vrot.lane.b32.xlu0 %v1132, 120
          %v1188 = vpop.permute.xlu0 %1187
          %1189 = vrot.lane.b32.xlu0 %v1133, 120
          %v1190 = vpop.permute.xlu0 %1189
          %1191 = vrot.lane.b32.xlu0 %v1134, 120
          %v1192 = vpop.permute.xlu0 %1191
          %1193 = vrot.lane.b32.xlu0 %v1135, 120
          %v1194 = vpop.permute.xlu0 %1193
          %1195 = vrot.lane.b32.xlu0 %v1136, 120
          %v1196 = vpop.permute.xlu0 %1195
          %1197 = vrot.lane.b32.xlu0 %v1137, 120
          %v1198 = vpop.permute.xlu0 %1197
          %1199 = vrot.lane.b32.xlu0 %v1138, 120
          %v1200 = vpop.permute.xlu0 %1199
          %1201 = vrot.lane.b32.xlu0 %v1139, 120
          %v1202 = vpop.permute.xlu0 %1201
          %1203 = vrot.lane.b32.xlu0 %v1140, 120
          %v1204 = vpop.permute.xlu0 %1203
          %1205 = vrot.lane.b32.xlu0 %v1141, 120
          %v1206 = vpop.permute.xlu0 %1205
          %v1223 = vsel %vm1142, %v1176, 0.0
          %v1224 = vsel %vm1142, %v1178, 0.0
          %v1225 = vsel %vm1142, %v1180, 0.0
          %v1226 = vsel %vm1142, %v1182, 0.0
          %v1227 = vsel %vm1142, %v1184, 0.0
          %v1228 = vsel %vm1142, %v1186, 0.0
          %v1229 = vsel %vm1142, %v1188, 0.0
          %v1230 = vsel %vm1142, %v1190, 0.0
          %v1231 = vsel %vm1142, %v1192, 0.0
          %v1232 = vsel %vm1142, %v1194, 0.0
          %v1233 = vsel %vm1142, %v1196, 0.0
          %v1234 = vsel %vm1142, %v1198, 0.0
          %v1235 = vsel %vm1142, %v1200, 0.0
          %v1236 = vsel %vm1142, %v1202, 0.0
          %v1237 = vsel %vm1142, %v1204, 0.0
          %v1238 = vsel %vm1142, %v1206, 0.0
          %v1239 = vpack.c.bf16 %v1144, %v1143
          %v1240 = vpack.c.bf16 %v1146, %v1145
          %v1241 = vpack.c.bf16 %v1148, %v1147
          %v1242 = vpack.c.bf16 %v1150, %v1149
          %v1243 = vpack.c.bf16 %v1152, %v1151
          %v1244 = vpack.c.bf16 %v1154, %v1153
          %v1245 = vpack.c.bf16 %v1156, %v1155
          %v1246 = vpack.c.bf16 %v1158, %v1157
          %v1255 = vunpack.c.l.b16 %v1239
          %v1256 = vunpack.c.h.b16 %v1239
          %v1257 = vunpack.c.l.b16 %v1240
          %v1258 = vunpack.c.h.b16 %v1240
          %v1259 = vunpack.c.l.b16 %v1241
          %v1260 = vunpack.c.h.b16 %v1241
          %v1261 = vunpack.c.l.b16 %v1242
          %v1262 = vunpack.c.h.b16 %v1242
          %v1263 = vunpack.c.l.b16 %v1243
          %v1264 = vunpack.c.h.b16 %v1243
          %v1265 = vunpack.c.l.b16 %v1244
          %v1266 = vunpack.c.h.b16 %v1244
          %v1267 = vunpack.c.l.b16 %v1245
          %v1268 = vunpack.c.h.b16 %v1245
          %v1269 = vunpack.c.l.b16 %v1246
          %v1270 = vunpack.c.h.b16 %v1246
          %v1271 = vpack.c.b16 %v1255, %v1255
          %v1272 = vpack.c.b16 %v1256, %v1256
          %v1273 = vpack.c.b16 %v1257, %v1257
          %v1274 = vpack.c.b16 %v1258, %v1258
          %v1275 = vpack.c.b16 %v1259, %v1259
          %v1276 = vpack.c.b16 %v1260, %v1260
          %v1277 = vpack.c.b16 %v1261, %v1261
          %v1278 = vpack.c.b16 %v1262, %v1262
          %v1279 = vpack.c.b16 %v1263, %v1263
          %v1280 = vpack.c.b16 %v1264, %v1264
          %v1281 = vpack.c.b16 %v1265, %v1265
          %v1282 = vpack.c.b16 %v1266, %v1266
          %v1283 = vpack.c.b16 %v1267, %v1267
          %v1284 = vpack.c.b16 %v1268, %v1268
          %v1285 = vpack.c.b16 %v1269, %v1269
          %v1286 = vpack.c.b16 %v1270, %v1270
          %1303 = vst [vmem:[#allocation2] sm:$0xf] %v1271
          %1304 = vst [vmem:[#allocation2 + $0x4] sm:$0xf] %v1272
          %1305 = vst [vmem:[#allocation2 + $0x8] sm:$0xf] %v1273
          %1306 = vst [vmem:[#allocation2 + $0xc] sm:$0xf] %v1274
          %1307 = vst [vmem:[#allocation2 + $0x10] sm:$0xf] %v1275
          %1308 = vst [vmem:[#allocation2 + $0x14] sm:$0xf] %v1276
          %1309 = vst [vmem:[#allocation2 + $0x18] sm:$0xf] %v1277
          %1310 = vst [vmem:[#allocation2 + $0x1c] sm:$0xf] %v1278
          %1311 = vst [vmem:[#allocation2 + $0x20] sm:$0xf] %v1279
          %1312 = vst [vmem:[#allocation2 + $0x24] sm:$0xf] %v1280
          %1313 = vst [vmem:[#allocation2 + $0x28] sm:$0xf] %v1281
          %1314 = vst [vmem:[#allocation2 + $0x2c] sm:$0xf] %v1282
          %1315 = vst [vmem:[#allocation2 + $0x30] sm:$0xf] %v1283
          %1316 = vst [vmem:[#allocation2 + $0x34] sm:$0xf] %v1284
          %1317 = vst [vmem:[#allocation2 + $0x38] sm:$0xf] %v1285
          %1318 = vst [vmem:[#allocation2 + $0x3c] sm:$0xf] %v1286
          %1319 = vxpose.xlu0.b32.start [1/16] %v1223, 128
          %1320 = vxpose.xlu0.b32.cont [2/16] %v1224, 128
          %1321 = vxpose.xlu0.b32.cont [3/16] %v1225, 128
          %1322 = vxpose.xlu0.b32.cont [4/16] %v1226, 128
          %1323 = vxpose.xlu0.b32.cont [5/16] %v1227, 128
          %1324 = vxpose.xlu0.b32.cont [6/16] %v1228, 128
          %1325 = vxpose.xlu0.b32.cont [7/16] %v1229, 128
          %1326 = vxpose.xlu0.b32.cont [8/16] %v1230, 128
          %1327 = vxpose.xlu0.b32.cont [9/16] %v1231, 128
          %1328 = vxpose.xlu0.b32.cont [10/16] %v1232, 128
          %1329 = vxpose.xlu0.b32.cont [11/16] %v1233, 128
          %1330 = vxpose.xlu0.b32.cont [12/16] %v1234, 128
          %1331 = vxpose.xlu0.b32.cont [13/16] %v1235, 128
          %1332 = vxpose.xlu0.b32.cont [14/16] %v1236, 128
          %1333 = vxpose.xlu0.b32.cont [15/16] %v1237, 128
          %1334 = vxpose.xlu0.b32.end [16/16] %v1238, 128
          %v1335 = vpop.trf.xlu0
          %v1336 = vpop.trf.xlu0
          %v1337 = vpop.trf.xlu0
          %v1338 = vpop.trf.xlu0
          %v1339 = vpop.trf.xlu0
          %v1340 = vpop.trf.xlu0
          %v1341 = vpop.trf.xlu0
          %v1342 = vpop.trf.xlu0
          %v1343 = vpop.trf.xlu0
          %v1344 = vpop.trf.xlu0
          %v1345 = vpop.trf.xlu0
          %v1346 = vpop.trf.xlu0
          %v1347 = vpop.trf.xlu0
          %v1348 = vpop.trf.xlu0
          %v1349 = vpop.trf.xlu0
          %v1350 = vpop.trf.xlu0
          %v1351 = vpack.c.bf16 %v1336, %v1335
          %v1352 = vpack.c.bf16 %v1338, %v1337
          %v1353 = vpack.c.bf16 %v1340, %v1339
          %v1354 = vpack.c.bf16 %v1342, %v1341
          %v1355 = vpack.c.bf16 %v1344, %v1343
          %v1356 = vpack.c.bf16 %v1346, %v1345
          %v1357 = vpack.c.bf16 %v1348, %v1347
          %v1358 = vpack.c.bf16 %v1350, %v1349
          %v1367 = vunpack.c.l.b16 %v1351
          %v1368 = vunpack.c.h.b16 %v1351
          %v1369 = vunpack.c.l.b16 %v1352
          %v1370 = vunpack.c.h.b16 %v1352
          %v1371 = vunpack.c.l.b16 %v1353
          %v1372 = vunpack.c.h.b16 %v1353
          %v1373 = vunpack.c.l.b16 %v1354
          %v1374 = vunpack.c.h.b16 %v1354
          %v1375 = vunpack.c.l.b16 %v1355
          %v1376 = vunpack.c.h.b16 %v1355
          %v1377 = vunpack.c.l.b16 %v1356
          %v1378 = vunpack.c.h.b16 %v1356
          %v1379 = vunpack.c.l.b16 %v1357
          %v1380 = vunpack.c.h.b16 %v1357
          %v1381 = vunpack.c.l.b16 %v1358
          %v1382 = vunpack.c.h.b16 %v1358
          %v1383 = vpack.c.b16 %v1367, %v1367
          %v1384 = vpack.c.b16 %v1368, %v1368
          %v1385 = vpack.c.b16 %v1369, %v1369
          %v1386 = vpack.c.b16 %v1370, %v1370
          %v1387 = vpack.c.b16 %v1371, %v1371
          %v1388 = vpack.c.b16 %v1372, %v1372
          %v1389 = vpack.c.b16 %v1373, %v1373
          %v1390 = vpack.c.b16 %v1374, %v1374
          %v1391 = vpack.c.b16 %v1375, %v1375
          %v1392 = vpack.c.b16 %v1376, %v1376
          %v1393 = vpack.c.b16 %v1377, %v1377
          %v1394 = vpack.c.b16 %v1378, %v1378
          %v1395 = vpack.c.b16 %v1379, %v1379
          %v1396 = vpack.c.b16 %v1380, %v1380
          %v1397 = vpack.c.b16 %v1381, %v1381
          %v1398 = vpack.c.b16 %v1382, %v1382
          %1415 = vst [vmem:[#allocation3] sm:$0xf] %v1383
          %1416 = vst [vmem:[#allocation3 + $0x4] sm:$0xf] %v1384
          %1417 = vst [vmem:[#allocation3 + $0x8] sm:$0xf] %v1385
          %1418 = vst [vmem:[#allocation3 + $0xc] sm:$0xf] %v1386
          %1419 = vst [vmem:[#allocation3 + $0x10] sm:$0xf] %v1387
          %1420 = vst [vmem:[#allocation3 + $0x14] sm:$0xf] %v1388
          %1421 = vst [vmem:[#allocation3 + $0x18] sm:$0xf] %v1389
          %1422 = vst [vmem:[#allocation3 + $0x1c] sm:$0xf] %v1390
          %1423 = vst [vmem:[#allocation3 + $0x20] sm:$0xf] %v1391
          %1424 = vst [vmem:[#allocation3 + $0x24] sm:$0xf] %v1392
          %1425 = vst [vmem:[#allocation3 + $0x28] sm:$0xf] %v1393
          %1426 = vst [vmem:[#allocation3 + $0x2c] sm:$0xf] %v1394
          %1427 = vst [vmem:[#allocation3 + $0x30] sm:$0xf] %v1395
          %1428 = vst [vmem:[#allocation3 + $0x34] sm:$0xf] %v1396
          %1429 = vst [vmem:[#allocation3 + $0x38] sm:$0xf] %v1397
          %1430 = vst [vmem:[#allocation3 + $0x3c] sm:$0xf] %v1398
          %1431 = vrot.lane.b32.xlu0 %v549, 16
          %v1432 = vpop.permute.xlu0 %1431
          %1433 = vrot.lane.b32.xlu0 %v550, 16
          %v1434 = vpop.permute.xlu0 %1433
          %1435 = vrot.lane.b32.xlu0 %v551, 16
          %v1436 = vpop.permute.xlu0 %1435
          %1437 = vrot.lane.b32.xlu0 %v552, 16
          %v1438 = vpop.permute.xlu0 %1437
          %1439 = vrot.lane.b32.xlu0 %v553, 16
          %v1440 = vpop.permute.xlu0 %1439
          %1441 = vrot.lane.b32.xlu0 %v554, 16
          %v1442 = vpop.permute.xlu0 %1441
          %1443 = vrot.lane.b32.xlu0 %v555, 16
          %v1444 = vpop.permute.xlu0 %1443
          %1445 = vrot.lane.b32.xlu0 %v556, 16
          %v1446 = vpop.permute.xlu0 %1445
          %1447 = vrot.lane.b32.xlu0 %v557, 16
          %v1448 = vpop.permute.xlu0 %1447
          %1449 = vrot.lane.b32.xlu0 %v558, 16
          %v1450 = vpop.permute.xlu0 %1449
          %1451 = vrot.lane.b32.xlu0 %v559, 16
          %v1452 = vpop.permute.xlu0 %1451
          %1453 = vrot.lane.b32.xlu0 %v560, 16
          %v1454 = vpop.permute.xlu0 %1453
          %1455 = vrot.lane.b32.xlu0 %v561, 16
          %v1456 = vpop.permute.xlu0 %1455
          %1457 = vrot.lane.b32.xlu0 %v562, 16
          %v1458 = vpop.permute.xlu0 %1457
          %1459 = vrot.lane.b32.xlu0 %v563, 16
          %v1460 = vpop.permute.xlu0 %1459
          %1461 = vrot.lane.b32.xlu0 %v564, 16
          %v1462 = vpop.permute.xlu0 %1461
          %v1479 = vmul.f32 %v487, %v1432
          %v1480 = vmul.f32 %v490, %v1434
          %v1481 = vmul.f32 %v495, %v1436
          %v1482 = vmul.f32 %v498, %v1438
          %v1483 = vmul.f32 %v503, %v1440
          %v1484 = vmul.f32 %v506, %v1442
          %v1485 = vmul.f32 %v511, %v1444
          %v1486 = vmul.f32 %v514, %v1446
          %v1487 = vmul.f32 %v519, %v1448
          %v1488 = vmul.f32 %v522, %v1450
          %v1489 = vmul.f32 %v527, %v1452
          %v1490 = vmul.f32 %v530, %v1454
          %v1491 = vmul.f32 %v535, %v1456
          %v1492 = vmul.f32 %v538, %v1458
          %v1493 = vmul.f32 %v543, %v1460
          %v1494 = vmul.f32 %v546, %v1462
          %1495 = vrot.lane.b32.xlu0 %v487, 108
          %v1496 = vpop.permute.xlu0 %1495
          %1497 = vrot.lane.b32.xlu0 %v490, 108
          %v1498 = vpop.permute.xlu0 %1497
          %1499 = vrot.lane.b32.xlu0 %v495, 108
          %v1500 = vpop.permute.xlu0 %1499
          %1501 = vrot.lane.b32.xlu0 %v498, 108
          %v1502 = vpop.permute.xlu0 %1501
          %1503 = vrot.lane.b32.xlu0 %v503, 108
          %v1504 = vpop.permute.xlu0 %1503
          %1505 = vrot.lane.b32.xlu0 %v506, 108
          %v1506 = vpop.permute.xlu0 %1505
          %1507 = vrot.lane.b32.xlu0 %v511, 108
          %v1508 = vpop.permute.xlu0 %1507
          %1509 = vrot.lane.b32.xlu0 %v514, 108
          %v1510 = vpop.permute.xlu0 %1509
          %1511 = vrot.lane.b32.xlu0 %v519, 108
          %v1512 = vpop.permute.xlu0 %1511
          %1513 = vrot.lane.b32.xlu0 %v522, 108
          %v1514 = vpop.permute.xlu0 %1513
          %1515 = vrot.lane.b32.xlu0 %v527, 108
          %v1516 = vpop.permute.xlu0 %1515
          %1517 = vrot.lane.b32.xlu0 %v530, 108
          %v1518 = vpop.permute.xlu0 %1517
          %1519 = vrot.lane.b32.xlu0 %v535, 108
          %v1520 = vpop.permute.xlu0 %1519
          %1521 = vrot.lane.b32.xlu0 %v538, 108
          %v1522 = vpop.permute.xlu0 %1521
          %1523 = vrot.lane.b32.xlu0 %v543, 108
          %v1524 = vpop.permute.xlu0 %1523
          %1525 = vrot.lane.b32.xlu0 %v546, 108
          %v1526 = vpop.permute.xlu0 %1525
          %v1543 = vsel %vm709, %v1496, %v887
          %v1544 = vsel %vm709, %v1498, %v889
          %v1545 = vsel %vm709, %v1500, %v891
          %v1546 = vsel %vm709, %v1502, %v893
          %v1547 = vsel %vm709, %v1504, %v895
          %v1548 = vsel %vm709, %v1506, %v897
          %v1549 = vsel %vm709, %v1508, %v899
          %v1550 = vsel %vm709, %v1510, %v901
          %v1551 = vsel %vm709, %v1512, %v903
          %v1552 = vsel %vm709, %v1514, %v905
          %v1553 = vsel %vm709, %v1516, %v907
          %v1554 = vsel %vm709, %v1518, %v909
          %v1555 = vsel %vm709, %v1520, %v911
          %v1556 = vsel %vm709, %v1522, %v913
          %v1557 = vsel %vm709, %v1524, %v915
          %v1558 = vsel %vm709, %v1526, %v917
          %v1559 = vmul.f32 %v1543, %v743
          %v1560 = vmul.f32 %v1544, %v745
          %v1561 = vmul.f32 %v1545, %v747
          %v1562 = vmul.f32 %v1546, %v749
          %v1563 = vmul.f32 %v1547, %v751
          %v1564 = vmul.f32 %v1548, %v753
          %v1565 = vmul.f32 %v1549, %v755
          %v1566 = vmul.f32 %v1550, %v757
          %v1567 = vmul.f32 %v1551, %v759
          %v1568 = vmul.f32 %v1552, %v761
          %v1569 = vmul.f32 %v1553, %v763
          %v1570 = vmul.f32 %v1554, %v765
          %v1571 = vmul.f32 %v1555, %v767
          %v1572 = vmul.f32 %v1556, %v769
          %v1573 = vmul.f32 %v1557, %v771
          %v1574 = vmul.f32 %v1558, %v773
          %1591 = vrot.lane.b32.xlu0 %v1559, 16
          %v1592 = vpop.permute.xlu0 %1591
          %1593 = vrot.lane.b32.xlu0 %v1560, 16
          %v1594 = vpop.permute.xlu0 %1593
          %1595 = vrot.lane.b32.xlu0 %v1561, 16
          %v1596 = vpop.permute.xlu0 %1595
          %1597 = vrot.lane.b32.xlu0 %v1562, 16
          %v1598 = vpop.permute.xlu0 %1597
          %1599 = vrot.lane.b32.xlu0 %v1563, 16
          %v1600 = vpop.permute.xlu0 %1599
          %1601 = vrot.lane.b32.xlu0 %v1564, 16
          %v1602 = vpop.permute.xlu0 %1601
          %1603 = vrot.lane.b32.xlu0 %v1565, 16
          %v1604 = vpop.permute.xlu0 %1603
          %1605 = vrot.lane.b32.xlu0 %v1566, 16
          %v1606 = vpop.permute.xlu0 %1605
          %1607 = vrot.lane.b32.xlu0 %v1567, 16
          %v1608 = vpop.permute.xlu0 %1607
          %1609 = vrot.lane.b32.xlu0 %v1568, 16
          %v1610 = vpop.permute.xlu0 %1609
          %1611 = vrot.lane.b32.xlu0 %v1569, 16
          %v1612 = vpop.permute.xlu0 %1611
          %1613 = vrot.lane.b32.xlu0 %v1570, 16
          %v1614 = vpop.permute.xlu0 %1613
          %1615 = vrot.lane.b32.xlu0 %v1571, 16
          %v1616 = vpop.permute.xlu0 %1615
          %1617 = vrot.lane.b32.xlu0 %v1572, 16
          %v1618 = vpop.permute.xlu0 %1617
          %1619 = vrot.lane.b32.xlu0 %v1573, 16
          %v1620 = vpop.permute.xlu0 %1619
          %1621 = vrot.lane.b32.xlu0 %v1574, 16
          %v1622 = vpop.permute.xlu0 %1621
          %v1639 = vadd.f32 %v1479, %v1592
          %v1640 = vadd.f32 %v1480, %v1594
          %v1641 = vadd.f32 %v1481, %v1596
          %v1642 = vadd.f32 %v1482, %v1598
          %v1643 = vadd.f32 %v1483, %v1600
          %v1644 = vadd.f32 %v1484, %v1602
          %v1645 = vadd.f32 %v1485, %v1604
          %v1646 = vadd.f32 %v1486, %v1606
          %v1647 = vadd.f32 %v1487, %v1608
          %v1648 = vadd.f32 %v1488, %v1610
          %v1649 = vadd.f32 %v1489, %v1612
          %v1650 = vadd.f32 %v1490, %v1614
          %v1651 = vadd.f32 %v1491, %v1616
          %v1652 = vadd.f32 %v1492, %v1618
          %v1653 = vadd.f32 %v1493, %v1620
          %v1654 = vadd.f32 %v1494, %v1622
          %1655 = vrot.lane.b32.xlu0 %v549, 24
          %v1656 = vpop.permute.xlu0 %1655
          %1657 = vrot.lane.b32.xlu0 %v550, 24
          %v1658 = vpop.permute.xlu0 %1657
          %1659 = vrot.lane.b32.xlu0 %v551, 24
          %v1660 = vpop.permute.xlu0 %1659
          %1661 = vrot.lane.b32.xlu0 %v552, 24
          %v1662 = vpop.permute.xlu0 %1661
          %1663 = vrot.lane.b32.xlu0 %v553, 24
          %v1664 = vpop.permute.xlu0 %1663
          %1665 = vrot.lane.b32.xlu0 %v554, 24
          %v1666 = vpop.permute.xlu0 %1665
          %1667 = vrot.lane.b32.xlu0 %v555, 24
          %v1668 = vpop.permute.xlu0 %1667
          %1669 = vrot.lane.b32.xlu0 %v556, 24
          %v1670 = vpop.permute.xlu0 %1669
          %1671 = vrot.lane.b32.xlu0 %v557, 24
          %v1672 = vpop.permute.xlu0 %1671
          %1673 = vrot.lane.b32.xlu0 %v558, 24
          %v1674 = vpop.permute.xlu0 %1673
          %1675 = vrot.lane.b32.xlu0 %v559, 24
          %v1676 = vpop.permute.xlu0 %1675
          %1677 = vrot.lane.b32.xlu0 %v560, 24
          %v1678 = vpop.permute.xlu0 %1677
          %1679 = vrot.lane.b32.xlu0 %v561, 24
          %v1680 = vpop.permute.xlu0 %1679
          %1681 = vrot.lane.b32.xlu0 %v562, 24
          %v1682 = vpop.permute.xlu0 %1681
          %1683 = vrot.lane.b32.xlu0 %v563, 24
          %v1684 = vpop.permute.xlu0 %1683
          %1685 = vrot.lane.b32.xlu0 %v564, 24
          %v1686 = vpop.permute.xlu0 %1685
          %v1703 = vmul.f32 %v487, %v1656
          %v1704 = vmul.f32 %v490, %v1658
          %v1705 = vmul.f32 %v495, %v1660
          %v1706 = vmul.f32 %v498, %v1662
          %v1707 = vmul.f32 %v503, %v1664
          %v1708 = vmul.f32 %v506, %v1666
          %v1709 = vmul.f32 %v511, %v1668
          %v1710 = vmul.f32 %v514, %v1670
          %v1711 = vmul.f32 %v519, %v1672
          %v1712 = vmul.f32 %v522, %v1674
          %v1713 = vmul.f32 %v527, %v1676
          %v1714 = vmul.f32 %v530, %v1678
          %v1715 = vmul.f32 %v535, %v1680
          %v1716 = vmul.f32 %v538, %v1682
          %v1717 = vmul.f32 %v543, %v1684
          %v1718 = vmul.f32 %v546, %v1686
          %1719 = vrot.lane.b32.xlu0 %v487, 100
          %v1720 = vpop.permute.xlu0 %1719
          %1721 = vrot.lane.b32.xlu0 %v490, 100
          %v1722 = vpop.permute.xlu0 %1721
          %1723 = vrot.lane.b32.xlu0 %v495, 100
          %v1724 = vpop.permute.xlu0 %1723
          %1725 = vrot.lane.b32.xlu0 %v498, 100
          %v1726 = vpop.permute.xlu0 %1725
          %1727 = vrot.lane.b32.xlu0 %v503, 100
          %v1728 = vpop.permute.xlu0 %1727
          %1729 = vrot.lane.b32.xlu0 %v506, 100
          %v1730 = vpop.permute.xlu0 %1729
          %1731 = vrot.lane.b32.xlu0 %v511, 100
          %v1732 = vpop.permute.xlu0 %1731
          %1733 = vrot.lane.b32.xlu0 %v514, 100
          %v1734 = vpop.permute.xlu0 %1733
          %1735 = vrot.lane.b32.xlu0 %v519, 100
          %v1736 = vpop.permute.xlu0 %1735
          %1737 = vrot.lane.b32.xlu0 %v522, 100
          %v1738 = vpop.permute.xlu0 %1737
          %1739 = vrot.lane.b32.xlu0 %v527, 100
          %v1740 = vpop.permute.xlu0 %1739
          %1741 = vrot.lane.b32.xlu0 %v530, 100
          %v1742 = vpop.permute.xlu0 %1741
          %1743 = vrot.lane.b32.xlu0 %v535, 100
          %v1744 = vpop.permute.xlu0 %1743
          %1745 = vrot.lane.b32.xlu0 %v538, 100
          %v1746 = vpop.permute.xlu0 %1745
          %1747 = vrot.lane.b32.xlu0 %v543, 100
          %v1748 = vpop.permute.xlu0 %1747
          %1749 = vrot.lane.b32.xlu0 %v546, 100
          %v1750 = vpop.permute.xlu0 %1749
          %v1767 = vsel %vm709, %v1720, %v1496
          %v1768 = vsel %vm709, %v1722, %v1498
          %v1769 = vsel %vm709, %v1724, %v1500
          %v1770 = vsel %vm709, %v1726, %v1502
          %v1771 = vsel %vm709, %v1728, %v1504
          %v1772 = vsel %vm709, %v1730, %v1506
          %v1773 = vsel %vm709, %v1732, %v1508
          %v1774 = vsel %vm709, %v1734, %v1510
          %v1775 = vsel %vm709, %v1736, %v1512
          %v1776 = vsel %vm709, %v1738, %v1514
          %v1777 = vsel %vm709, %v1740, %v1516
          %v1778 = vsel %vm709, %v1742, %v1518
          %v1779 = vsel %vm709, %v1744, %v1520
          %v1780 = vsel %vm709, %v1746, %v1522
          %v1781 = vsel %vm709, %v1748, %v1524
          %v1782 = vsel %vm709, %v1750, %v1526
          %v1783 = vmul.f32 %v1767, %v743
          %v1784 = vmul.f32 %v1768, %v745
          %v1785 = vmul.f32 %v1769, %v747
          %v1786 = vmul.f32 %v1770, %v749
          %v1787 = vmul.f32 %v1771, %v751
          %v1788 = vmul.f32 %v1772, %v753
          %v1789 = vmul.f32 %v1773, %v755
          %v1790 = vmul.f32 %v1774, %v757
          %v1791 = vmul.f32 %v1775, %v759
          %v1792 = vmul.f32 %v1776, %v761
          %v1793 = vmul.f32 %v1777, %v763
          %v1794 = vmul.f32 %v1778, %v765
          %v1795 = vmul.f32 %v1779, %v767
          %v1796 = vmul.f32 %v1780, %v769
          %v1797 = vmul.f32 %v1781, %v771
          %v1798 = vmul.f32 %v1782, %v773
          %1815 = vrot.lane.b32.xlu0 %v1783, 24
          %v1816 = vpop.permute.xlu0 %1815
          %1817 = vrot.lane.b32.xlu0 %v1784, 24
          %v1818 = vpop.permute.xlu0 %1817
          %1819 = vrot.lane.b32.xlu0 %v1785, 24
          %v1820 = vpop.permute.xlu0 %1819
          %1821 = vrot.lane.b32.xlu0 %v1786, 24
          %v1822 = vpop.permute.xlu0 %1821
          %1823 = vrot.lane.b32.xlu0 %v1787, 24
          %v1824 = vpop.permute.xlu0 %1823
          %1825 = vrot.lane.b32.xlu0 %v1788, 24
          %v1826 = vpop.permute.xlu0 %1825
          %1827 = vrot.lane.b32.xlu0 %v1789, 24
          %v1828 = vpop.permute.xlu0 %1827
          %1829 = vrot.lane.b32.xlu0 %v1790, 24
          %v1830 = vpop.permute.xlu0 %1829
          %1831 = vrot.lane.b32.xlu0 %v1791, 24
          %v1832 = vpop.permute.xlu0 %1831
          %1833 = vrot.lane.b32.xlu0 %v1792, 24
          %v1834 = vpop.permute.xlu0 %1833
          %1835 = vrot.lane.b32.xlu0 %v1793, 24
          %v1836 = vpop.permute.xlu0 %1835
          %1837 = vrot.lane.b32.xlu0 %v1794, 24
          %v1838 = vpop.permute.xlu0 %1837
          %1839 = vrot.lane.b32.xlu0 %v1795, 24
          %v1840 = vpop.permute.xlu0 %1839
          %1841 = vrot.lane.b32.xlu0 %v1796, 24
          %v1842 = vpop.permute.xlu0 %1841
          %1843 = vrot.lane.b32.xlu0 %v1797, 24
          %v1844 = vpop.permute.xlu0 %1843
          %1845 = vrot.lane.b32.xlu0 %v1798, 24
          %v1846 = vpop.permute.xlu0 %1845
          %v1863 = vadd.f32 %v1703, %v1816
          %v1864 = vadd.f32 %v1704, %v1818
          %v1865 = vadd.f32 %v1705, %v1820
          %v1866 = vadd.f32 %v1706, %v1822
          %v1867 = vadd.f32 %v1707, %v1824
          %v1868 = vadd.f32 %v1708, %v1826
          %v1869 = vadd.f32 %v1709, %v1828
          %v1870 = vadd.f32 %v1710, %v1830
          %v1871 = vadd.f32 %v1711, %v1832
          %v1872 = vadd.f32 %v1712, %v1834
          %v1873 = vadd.f32 %v1713, %v1836
          %v1874 = vadd.f32 %v1714, %v1838
          %v1875 = vadd.f32 %v1715, %v1840
          %v1876 = vadd.f32 %v1716, %v1842
          %v1877 = vadd.f32 %v1717, %v1844
          %v1878 = vadd.f32 %v1718, %v1846
          %v1879 = vmul.f32 %v1863, %v1049
          %v1880 = vmul.f32 %v1864, %v1054
          %v1881 = vmul.f32 %v1865, %v1059
          %v1882 = vmul.f32 %v1866, %v1064
          %v1883 = vmul.f32 %v1867, %v1069
          %v1884 = vmul.f32 %v1868, %v1074
          %v1885 = vmul.f32 %v1869, %v1079
          %v1886 = vmul.f32 %v1870, %v1084
          %v1887 = vmul.f32 %v1871, %v1089
          %v1888 = vmul.f32 %v1872, %v1094
          %v1889 = vmul.f32 %v1873, %v1099
          %v1890 = vmul.f32 %v1874, %v1104
          %v1891 = vmul.f32 %v1875, %v1109
          %v1892 = vmul.f32 %v1876, %v1114
          %v1893 = vmul.f32 %v1877, %v1119
          %v1894 = vmul.f32 %v1878, %v1124
          %1911 = vrot.lane.b32.xlu0 %v1639, 112
          %v1912 = vpop.permute.xlu0 %1911
          %1913 = vrot.lane.b32.xlu0 %v1640, 112
          %v1914 = vpop.permute.xlu0 %1913
          %1915 = vrot.lane.b32.xlu0 %v1641, 112
          %v1916 = vpop.permute.xlu0 %1915
          %1917 = vrot.lane.b32.xlu0 %v1642, 112
          %v1918 = vpop.permute.xlu0 %1917
          %1919 = vrot.lane.b32.xlu0 %v1643, 112
          %v1920 = vpop.permute.xlu0 %1919
          %1921 = vrot.lane.b32.xlu0 %v1644, 112
          %v1922 = vpop.permute.xlu0 %1921
          %1923 = vrot.lane.b32.xlu0 %v1645, 112
          %v1924 = vpop.permute.xlu0 %1923
          %1925 = vrot.lane.b32.xlu0 %v1646, 112
          %v1926 = vpop.permute.xlu0 %1925
          %1927 = vrot.lane.b32.xlu0 %v1647, 112
          %v1928 = vpop.permute.xlu0 %1927
          %1929 = vrot.lane.b32.xlu0 %v1648, 112
          %v1930 = vpop.permute.xlu0 %1929
          %1931 = vrot.lane.b32.xlu0 %v1649, 112
          %v1932 = vpop.permute.xlu0 %1931
          %1933 = vrot.lane.b32.xlu0 %v1650, 112
          %v1934 = vpop.permute.xlu0 %1933
          %1935 = vrot.lane.b32.xlu0 %v1651, 112
          %v1936 = vpop.permute.xlu0 %1935
          %1937 = vrot.lane.b32.xlu0 %v1652, 112
          %v1938 = vpop.permute.xlu0 %1937
          %1939 = vrot.lane.b32.xlu0 %v1653, 112
          %v1940 = vpop.permute.xlu0 %1939
          %1941 = vrot.lane.b32.xlu0 %v1654, 112
          %v1942 = vpop.permute.xlu0 %1941
          %v1959 = vsel %vm1142, %v1912, 0.0
          %v1960 = vsel %vm1142, %v1914, 0.0
          %v1961 = vsel %vm1142, %v1916, 0.0
          %v1962 = vsel %vm1142, %v1918, 0.0
          %v1963 = vsel %vm1142, %v1920, 0.0
          %v1964 = vsel %vm1142, %v1922, 0.0
          %v1965 = vsel %vm1142, %v1924, 0.0
          %v1966 = vsel %vm1142, %v1926, 0.0
          %v1967 = vsel %vm1142, %v1928, 0.0
          %v1968 = vsel %vm1142, %v1930, 0.0
          %v1969 = vsel %vm1142, %v1932, 0.0
          %v1970 = vsel %vm1142, %v1934, 0.0
          %v1971 = vsel %vm1142, %v1936, 0.0
          %v1972 = vsel %vm1142, %v1938, 0.0
          %v1973 = vsel %vm1142, %v1940, 0.0
          %v1974 = vsel %vm1142, %v1942, 0.0
          %1991 = vrot.lane.b32.xlu0 %v1879, 104
          %v1992 = vpop.permute.xlu0 %1991
          %1993 = vrot.lane.b32.xlu0 %v1880, 104
          %v1994 = vpop.permute.xlu0 %1993
          %1995 = vrot.lane.b32.xlu0 %v1881, 104
          %v1996 = vpop.permute.xlu0 %1995
          %1997 = vrot.lane.b32.xlu0 %v1882, 104
          %v1998 = vpop.permute.xlu0 %1997
          %1999 = vrot.lane.b32.xlu0 %v1883, 104
          %v2000 = vpop.permute.xlu0 %1999
          %2001 = vrot.lane.b32.xlu0 %v1884, 104
          %v2002 = vpop.permute.xlu0 %2001
          %2003 = vrot.lane.b32.xlu0 %v1885, 104
          %v2004 = vpop.permute.xlu0 %2003
          %2005 = vrot.lane.b32.xlu0 %v1886, 104
          %v2006 = vpop.permute.xlu0 %2005
          %2007 = vrot.lane.b32.xlu0 %v1887, 104
          %v2008 = vpop.permute.xlu0 %2007
          %2009 = vrot.lane.b32.xlu0 %v1888, 104
          %v2010 = vpop.permute.xlu0 %2009
          %2011 = vrot.lane.b32.xlu0 %v1889, 104
          %v2012 = vpop.permute.xlu0 %2011
          %2013 = vrot.lane.b32.xlu0 %v1890, 104
          %v2014 = vpop.permute.xlu0 %2013
          %2015 = vrot.lane.b32.xlu0 %v1891, 104
          %v2016 = vpop.permute.xlu0 %2015
          %2017 = vrot.lane.b32.xlu0 %v1892, 104
          %v2018 = vpop.permute.xlu0 %2017
          %2019 = vrot.lane.b32.xlu0 %v1893, 104
          %v2020 = vpop.permute.xlu0 %2019
          %2021 = vrot.lane.b32.xlu0 %v1894, 104
          %v2022 = vpop.permute.xlu0 %2021
          %v2039 = vsel %vm1142, %v1992, 0.0
          %v2040 = vsel %vm1142, %v1994, 0.0
          %v2041 = vsel %vm1142, %v1996, 0.0
          %v2042 = vsel %vm1142, %v1998, 0.0
          %v2043 = vsel %vm1142, %v2000, 0.0
          %v2044 = vsel %vm1142, %v2002, 0.0
          %v2045 = vsel %vm1142, %v2004, 0.0
          %v2046 = vsel %vm1142, %v2006, 0.0
          %v2047 = vsel %vm1142, %v2008, 0.0
          %v2048 = vsel %vm1142, %v2010, 0.0
          %v2049 = vsel %vm1142, %v2012, 0.0
          %v2050 = vsel %vm1142, %v2014, 0.0
          %v2051 = vsel %vm1142, %v2016, 0.0
          %v2052 = vsel %vm1142, %v2018, 0.0
          %v2053 = vsel %vm1142, %v2020, 0.0
          %v2054 = vsel %vm1142, %v2022, 0.0
          %v2055 = vpack.c.bf16 %v1960, %v1959
          %v2056 = vpack.c.bf16 %v1962, %v1961
          %v2057 = vpack.c.bf16 %v1964, %v1963
          %v2058 = vpack.c.bf16 %v1966, %v1965
          %v2059 = vpack.c.bf16 %v1968, %v1967
          %v2060 = vpack.c.bf16 %v1970, %v1969
          %v2061 = vpack.c.bf16 %v1972, %v1971
          %v2062 = vpack.c.bf16 %v1974, %v1973
          %v2071 = vunpack.c.l.b16 %v2055
          %v2072 = vunpack.c.h.b16 %v2055
          %v2073 = vunpack.c.l.b16 %v2056
          %v2074 = vunpack.c.h.b16 %v2056
          %v2075 = vunpack.c.l.b16 %v2057
          %v2076 = vunpack.c.h.b16 %v2057
          %v2077 = vunpack.c.l.b16 %v2058
          %v2078 = vunpack.c.h.b16 %v2058
          %v2079 = vunpack.c.l.b16 %v2059
          %v2080 = vunpack.c.h.b16 %v2059
          %v2081 = vunpack.c.l.b16 %v2060
          %v2082 = vunpack.c.h.b16 %v2060
          %v2083 = vunpack.c.l.b16 %v2061
          %v2084 = vunpack.c.h.b16 %v2061
          %v2085 = vunpack.c.l.b16 %v2062
          %v2086 = vunpack.c.h.b16 %v2062
          %v2087 = vpack.c.b16 %v2071, %v2071
          %v2088 = vpack.c.b16 %v2072, %v2072
          %v2089 = vpack.c.b16 %v2073, %v2073
          %v2090 = vpack.c.b16 %v2074, %v2074
          %v2091 = vpack.c.b16 %v2075, %v2075
          %v2092 = vpack.c.b16 %v2076, %v2076
          %v2093 = vpack.c.b16 %v2077, %v2077
          %v2094 = vpack.c.b16 %v2078, %v2078
          %v2095 = vpack.c.b16 %v2079, %v2079
          %v2096 = vpack.c.b16 %v2080, %v2080
          %v2097 = vpack.c.b16 %v2081, %v2081
          %v2098 = vpack.c.b16 %v2082, %v2082
          %v2099 = vpack.c.b16 %v2083, %v2083
          %v2100 = vpack.c.b16 %v2084, %v2084
          %v2101 = vpack.c.b16 %v2085, %v2085
          %v2102 = vpack.c.b16 %v2086, %v2086
          %s2119 = sadd.s32 0, 16
          %s2120 = smul.addr %s2119, 4
          %s2121 = scalar_lea.vmem [#allocation2], %s2120
          %2122 = vst [vmem:[%s2121] sm:$0xf] %v2087
          %2123 = vst [vmem:[%s2121 + $0x4] sm:$0xf] %v2088
          %2124 = vst [vmem:[%s2121 + $0x8] sm:$0xf] %v2089
          %2125 = vst [vmem:[%s2121 + $0xc] sm:$0xf] %v2090
          %2126 = vst [vmem:[%s2121 + $0x10] sm:$0xf] %v2091
          %2127 = vst [vmem:[%s2121 + $0x14] sm:$0xf] %v2092
          %2128 = vst [vmem:[%s2121 + $0x18] sm:$0xf] %v2093
          %2129 = vst [vmem:[%s2121 + $0x1c] sm:$0xf] %v2094
          %2130 = vst [vmem:[%s2121 + $0x20] sm:$0xf] %v2095
          %2131 = vst [vmem:[%s2121 + $0x24] sm:$0xf] %v2096
          %2132 = vst [vmem:[%s2121 + $0x28] sm:$0xf] %v2097
          %2133 = vst [vmem:[%s2121 + $0x2c] sm:$0xf] %v2098
          %2134 = vst [vmem:[%s2121 + $0x30] sm:$0xf] %v2099
          %2135 = vst [vmem:[%s2121 + $0x34] sm:$0xf] %v2100
          %2136 = vst [vmem:[%s2121 + $0x38] sm:$0xf] %v2101
          %2137 = vst [vmem:[%s2121 + $0x3c] sm:$0xf] %v2102
          %2138 = vxpose.xlu0.b32.start [1/16] %v2039, 128
          %2139 = vxpose.xlu0.b32.cont [2/16] %v2040, 128
          %2140 = vxpose.xlu0.b32.cont [3/16] %v2041, 128
          %2141 = vxpose.xlu0.b32.cont [4/16] %v2042, 128
          %2142 = vxpose.xlu0.b32.cont [5/16] %v2043, 128
          %2143 = vxpose.xlu0.b32.cont [6/16] %v2044, 128
          %2144 = vxpose.xlu0.b32.cont [7/16] %v2045, 128
          %2145 = vxpose.xlu0.b32.cont [8/16] %v2046, 128
          %2146 = vxpose.xlu0.b32.cont [9/16] %v2047, 128
          %2147 = vxpose.xlu0.b32.cont [10/16] %v2048, 128
          %2148 = vxpose.xlu0.b32.cont [11/16] %v2049, 128
          %2149 = vxpose.xlu0.b32.cont [12/16] %v2050, 128
          %2150 = vxpose.xlu0.b32.cont [13/16] %v2051, 128
          %2151 = vxpose.xlu0.b32.cont [14/16] %v2052, 128
          %2152 = vxpose.xlu0.b32.cont [15/16] %v2053, 128
          %2153 = vxpose.xlu0.b32.end [16/16] %v2054, 128
          %v2154 = vpop.trf.xlu0
          %v2155 = vpop.trf.xlu0
          %v2156 = vpop.trf.xlu0
          %v2157 = vpop.trf.xlu0
          %v2158 = vpop.trf.xlu0
          %v2159 = vpop.trf.xlu0
          %v2160 = vpop.trf.xlu0
          %v2161 = vpop.trf.xlu0
          %v2162 = vpop.trf.xlu0
          %v2163 = vpop.trf.xlu0
          %v2164 = vpop.trf.xlu0
          %v2165 = vpop.trf.xlu0
          %v2166 = vpop.trf.xlu0
          %v2167 = vpop.trf.xlu0
          %v2168 = vpop.trf.xlu0
          %v2169 = vpop.trf.xlu0
          %v2170 = vpack.c.bf16 %v2155, %v2154
          %v2171 = vpack.c.bf16 %v2157, %v2156
          %v2172 = vpack.c.bf16 %v2159, %v2158
          %v2173 = vpack.c.bf16 %v2161, %v2160
          %v2174 = vpack.c.bf16 %v2163, %v2162
          %v2175 = vpack.c.bf16 %v2165, %v2164
          %v2176 = vpack.c.bf16 %v2167, %v2166
          %v2177 = vpack.c.bf16 %v2169, %v2168
          %v2186 = vunpack.c.l.b16 %v2170
          %v2187 = vunpack.c.h.b16 %v2170
          %v2188 = vunpack.c.l.b16 %v2171
          %v2189 = vunpack.c.h.b16 %v2171
          %v2190 = vunpack.c.l.b16 %v2172
          %v2191 = vunpack.c.h.b16 %v2172
          %v2192 = vunpack.c.l.b16 %v2173
          %v2193 = vunpack.c.h.b16 %v2173
          %v2194 = vunpack.c.l.b16 %v2174
          %v2195 = vunpack.c.h.b16 %v2174
          %v2196 = vunpack.c.l.b16 %v2175
          %v2197 = vunpack.c.h.b16 %v2175
          %v2198 = vunpack.c.l.b16 %v2176
          %v2199 = vunpack.c.h.b16 %v2176
          %v2200 = vunpack.c.l.b16 %v2177
          %v2201 = vunpack.c.h.b16 %v2177
          %v2202 = vpack.c.b16 %v2186, %v2186
          %v2203 = vpack.c.b16 %v2187, %v2187
          %v2204 = vpack.c.b16 %v2188, %v2188
          %v2205 = vpack.c.b16 %v2189, %v2189
          %v2206 = vpack.c.b16 %v2190, %v2190
          %v2207 = vpack.c.b16 %v2191, %v2191
          %v2208 = vpack.c.b16 %v2192, %v2192
          %v2209 = vpack.c.b16 %v2193, %v2193
          %v2210 = vpack.c.b16 %v2194, %v2194
          %v2211 = vpack.c.b16 %v2195, %v2195
          %v2212 = vpack.c.b16 %v2196, %v2196
          %v2213 = vpack.c.b16 %v2197, %v2197
          %v2214 = vpack.c.b16 %v2198, %v2198
          %v2215 = vpack.c.b16 %v2199, %v2199
          %v2216 = vpack.c.b16 %v2200, %v2200
          %v2217 = vpack.c.b16 %v2201, %v2201
          %s2234 = scalar_lea.vmem [#allocation3], 64
          %2235 = vst [vmem:[%s2234] sm:$0xf] %v2202
          %2236 = vst [vmem:[%s2234 + $0x4] sm:$0xf] %v2203
          %2237 = vst [vmem:[%s2234 + $0x8] sm:$0xf] %v2204
          %2238 = vst [vmem:[%s2234 + $0xc] sm:$0xf] %v2205
          %2239 = vst [vmem:[%s2234 + $0x10] sm:$0xf] %v2206
          %2240 = vst [vmem:[%s2234 + $0x14] sm:$0xf] %v2207
          %2241 = vst [vmem:[%s2234 + $0x18] sm:$0xf] %v2208
          %2242 = vst [vmem:[%s2234 + $0x1c] sm:$0xf] %v2209
          %2243 = vst [vmem:[%s2234 + $0x20] sm:$0xf] %v2210
          %2244 = vst [vmem:[%s2234 + $0x24] sm:$0xf] %v2211
          %2245 = vst [vmem:[%s2234 + $0x28] sm:$0xf] %v2212
          %2246 = vst [vmem:[%s2234 + $0x2c] sm:$0xf] %v2213
          %2247 = vst [vmem:[%s2234 + $0x30] sm:$0xf] %v2214
          %2248 = vst [vmem:[%s2234 + $0x34] sm:$0xf] %v2215
          %2249 = vst [vmem:[%s2234 + $0x38] sm:$0xf] %v2216
          %2250 = vst [vmem:[%s2234 + $0x3c] sm:$0xf] %v2217
        $region48: #{tpu_custom_call.1} parent=43 // pred_fallthru
          _
        %s2251 = smul.u32 %s27, 128
        %v2252 = vlaneseq
        %v2253 = vshrl.u32 %v2252, 7
        %v2254 = vadd.s32 %v2253, 8
        %v2255 = vadd.s32 %v2253, 16
        %v2256 = vadd.s32 %v2253, 24
        %v2257 = vadd.s32 %v2253, 32
        %v2258 = vadd.s32 %v2253, 40
        %v2259 = vadd.s32 %v2253, 48
        %v2260 = vadd.s32 %v2253, 56
        %v2261 = vadd.s32 %v2253, 64
        %v2262 = vadd.s32 %v2253, 72
        %v2263 = vadd.s32 %v2253, 80
        %v2264 = vadd.s32 %v2253, 88
        %v2265 = vadd.s32 %v2253, 96
        %v2266 = vadd.s32 %v2253, 104
        %v2267 = vadd.s32 %v2253, 112
        %v2268 = vadd.s32 %v2253, 120
        %v2269 = vstv %s2251
        %v2270 = vadd.s32 %v2269, %v2253
        %v2271 = vadd.s32 %v2269, %v2254
        %v2272 = vadd.s32 %v2269, %v2255
        %v2273 = vadd.s32 %v2269, %v2256
        %v2274 = vadd.s32 %v2269, %v2257
        %v2275 = vadd.s32 %v2269, %v2258
        %v2276 = vadd.s32 %v2269, %v2259
        %v2277 = vadd.s32 %v2269, %v2260
        %v2278 = vadd.s32 %v2269, %v2261
        %v2279 = vadd.s32 %v2269, %v2262
        %v2280 = vadd.s32 %v2269, %v2263
        %v2281 = vadd.s32 %v2269, %v2264
        %v2282 = vadd.s32 %v2269, %v2265
        %v2283 = vadd.s32 %v2269, %v2266
        %v2284 = vadd.s32 %v2269, %v2267
        %v2285 = vadd.s32 %v2269, %v2268
        %s2286 = sshra.s32 %s2251, 3
        %s2287 = sand.u32 %s2251, 7
        %s2288 = smul.addr %s2286, 4
        %s2289 = scalar_lea.vmem [#allocation2], %s2288
        %v2290 = vld [vmem:[%s2289] sm:$0xf]
        %v2291 = vld [vmem:[%s2289 + $0x4] sm:$0xf]
        %v2292 = vld [vmem:[%s2289 + $0x8] sm:$0xf]
        %v2293 = vld [vmem:[%s2289 + $0xc] sm:$0xf]
        %v2294 = vld [vmem:[%s2289 + $0x10] sm:$0xf]
        %v2295 = vld [vmem:[%s2289 + $0x14] sm:$0xf]
        %v2296 = vld [vmem:[%s2289 + $0x18] sm:$0xf]
        %v2297 = vld [vmem:[%s2289 + $0x1c] sm:$0xf]
        %v2298 = vld [vmem:[%s2289 + $0x20] sm:$0xf]
        %v2299 = vld [vmem:[%s2289 + $0x24] sm:$0xf]
        %v2300 = vld [vmem:[%s2289 + $0x28] sm:$0xf]
        %v2301 = vld [vmem:[%s2289 + $0x2c] sm:$0xf]
        %v2302 = vld [vmem:[%s2289 + $0x30] sm:$0xf]
        %v2303 = vld [vmem:[%s2289 + $0x34] sm:$0xf]
        %v2304 = vld [vmem:[%s2289 + $0x38] sm:$0xf]
        %v2305 = vld [vmem:[%s2289 + $0x3c] sm:$0xf]
        %s2306 = sadd.s32 %s2286, 16
        %s2307 = smul.addr %s2306, 4
        %s2308 = scalar_lea.vmem [#allocation2], %s2307
        %v2309 = vld [vmem:[%s2308] sm:$0xf]
        %v2310 = vld [vmem:[%s2308 + $0x4] sm:$0xf]
        %v2311 = vld [vmem:[%s2308 + $0x8] sm:$0xf]
        %v2312 = vld [vmem:[%s2308 + $0xc] sm:$0xf]
        %v2313 = vld [vmem:[%s2308 + $0x10] sm:$0xf]
        %v2314 = vld [vmem:[%s2308 + $0x14] sm:$0xf]
        %v2315 = vld [vmem:[%s2308 + $0x18] sm:$0xf]
        %v2316 = vld [vmem:[%s2308 + $0x1c] sm:$0xf]
        %v2317 = vld [vmem:[%s2308 + $0x20] sm:$0xf]
        %v2318 = vld [vmem:[%s2308 + $0x24] sm:$0xf]
        %v2319 = vld [vmem:[%s2308 + $0x28] sm:$0xf]
        %v2320 = vld [vmem:[%s2308 + $0x2c] sm:$0xf]
        %v2321 = vld [vmem:[%s2308 + $0x30] sm:$0xf]
        %v2322 = vld [vmem:[%s2308 + $0x34] sm:$0xf]
        %v2323 = vld [vmem:[%s2308 + $0x38] sm:$0xf]
        %v2324 = vld [vmem:[%s2308 + $0x3c] sm:$0xf]
        %v2325 = vlaneseq
        %v2326 = vand.u32 %v2325, 127
        %v2327 = vld [vmem:[%s340] sm:$0x1]
        %vm2328 = vcmp.gt.s32.totalorder %v2270, %v2326
        %vm2329 = vcmp.gt.s32.totalorder %v2271, %v2326
        %vm2330 = vcmp.gt.s32.totalorder %v2272, %v2326
        %vm2331 = vcmp.gt.s32.totalorder %v2273, %v2326
        %vm2332 = vcmp.gt.s32.totalorder %v2274, %v2326
        %vm2333 = vcmp.gt.s32.totalorder %v2275, %v2326
        %vm2334 = vcmp.gt.s32.totalorder %v2276, %v2326
        %vm2335 = vcmp.gt.s32.totalorder %v2277, %v2326
        %vm2336 = vcmp.gt.s32.totalorder %v2278, %v2326
        %vm2337 = vcmp.gt.s32.totalorder %v2279, %v2326
        %vm2338 = vcmp.gt.s32.totalorder %v2280, %v2326
        %vm2339 = vcmp.gt.s32.totalorder %v2281, %v2326
        %vm2340 = vcmp.gt.s32.totalorder %v2282, %v2326
        %vm2341 = vcmp.gt.s32.totalorder %v2283, %v2326
        %vm2342 = vcmp.gt.s32.totalorder %v2284, %v2326
        %vm2343 = vcmp.gt.s32.totalorder %v2285, %v2326
        %v2344 = vsel %vm2328, -3.5355338e+11, 0.0
        %v2345 = vsel %vm2329, -3.5355338e+11, 0.0
        %v2346 = vsel %vm2330, -3.5355338e+11, 0.0
        %v2347 = vsel %vm2331, -3.5355338e+11, 0.0
        %v2348 = vsel %vm2332, -3.5355338e+11, 0.0
        %v2349 = vsel %vm2333, -3.5355338e+11, 0.0
        %v2350 = vsel %vm2334, -3.5355338e+11, 0.0
        %v2351 = vsel %vm2335, -3.5355338e+11, 0.0
        %v2352 = vsel %vm2336, -3.5355338e+11, 0.0
        %v2353 = vsel %vm2337, -3.5355338e+11, 0.0
        %v2354 = vsel %vm2338, -3.5355338e+11, 0.0
        %v2355 = vsel %vm2339, -3.5355338e+11, 0.0
        %v2356 = vsel %vm2340, -3.5355338e+11, 0.0
        %v2357 = vsel %vm2341, -3.5355338e+11, 0.0
        %v2358 = vsel %vm2342, -3.5355338e+11, 0.0
        %v2359 = vsel %vm2343, -3.5355338e+11, 0.0
        %v2361 = vlaneseq
        %v2362 = vshrl.u32 %v2361, 7
        %v2363 = vsub.s32 0, %v2362
        %v2364 = vrot.slane %v2327, %v2363
        %v2366 = vadd.f32 %v2364, %v2344
        %v2367 = vadd.f32 %v2364, %v2345
        %v2368 = vadd.f32 %v2364, %v2346
        %v2369 = vadd.f32 %v2364, %v2347
        %v2370 = vadd.f32 %v2364, %v2348
        %v2371 = vadd.f32 %v2364, %v2349
        %v2372 = vadd.f32 %v2364, %v2350
        %v2373 = vadd.f32 %v2364, %v2351
        %v2374 = vadd.f32 %v2364, %v2352
        %v2375 = vadd.f32 %v2364, %v2353
        %v2376 = vadd.f32 %v2364, %v2354
        %v2377 = vadd.f32 %v2364, %v2355
        %v2378 = vadd.f32 %v2364, %v2356
        %v2379 = vadd.f32 %v2364, %v2357
        %v2380 = vadd.f32 %v2364, %v2358
        %v2381 = vadd.f32 %v2364, %v2359
        %v2382 = vld [vmem:[#allocation3] sm:$0xf]
        %v2383 = vld [vmem:[#allocation3 + $0x4] sm:$0xf]
        %v2384 = vld [vmem:[#allocation3 + $0x8] sm:$0xf]
        %v2385 = vld [vmem:[#allocation3 + $0xc] sm:$0xf]
        %v2386 = vld [vmem:[#allocation3 + $0x10] sm:$0xf]
        %v2387 = vld [vmem:[#allocation3 + $0x14] sm:$0xf]
        %v2388 = vld [vmem:[#allocation3 + $0x18] sm:$0xf]
        %v2389 = vld [vmem:[#allocation3 + $0x1c] sm:$0xf]
        %v2390 = vld [vmem:[#allocation3 + $0x20] sm:$0xf]
        %v2391 = vld [vmem:[#allocation3 + $0x24] sm:$0xf]
        %v2392 = vld [vmem:[#allocation3 + $0x28] sm:$0xf]
        %v2393 = vld [vmem:[#allocation3 + $0x2c] sm:$0xf]
        %v2394 = vld [vmem:[#allocation3 + $0x30] sm:$0xf]
        %v2395 = vld [vmem:[#allocation3 + $0x34] sm:$0xf]
        %v2396 = vld [vmem:[#allocation3 + $0x38] sm:$0xf]
        %v2397 = vld [vmem:[#allocation3 + $0x3c] sm:$0xf]
        %v2414 = vunpack.c.l.b16 %v2290
        %v2415 = vunpack.c.l.b16 %v2291
        %v2416 = vunpack.c.l.b16 %v2292
        %v2417 = vunpack.c.l.b16 %v2293
        %v2418 = vunpack.c.l.b16 %v2294
        %v2419 = vunpack.c.l.b16 %v2295
        %v2420 = vunpack.c.l.b16 %v2296
        %v2421 = vunpack.c.l.b16 %v2297
        %v2422 = vunpack.c.l.b16 %v2298
        %v2423 = vunpack.c.l.b16 %v2299
        %v2424 = vunpack.c.l.b16 %v2300
        %v2425 = vunpack.c.l.b16 %v2301
        %v2426 = vunpack.c.l.b16 %v2302
        %v2427 = vunpack.c.l.b16 %v2303
        %v2428 = vunpack.c.l.b16 %v2304
        %v2429 = vunpack.c.l.b16 %v2305
        %v2430 = vpack.c.b16 %v2415, %v2414
        %v2431 = vpack.c.b16 %v2417, %v2416
        %v2432 = vpack.c.b16 %v2419, %v2418
        %v2433 = vpack.c.b16 %v2421, %v2420
        %v2434 = vpack.c.b16 %v2423, %v2422
        %v2435 = vpack.c.b16 %v2425, %v2424
        %v2436 = vpack.c.b16 %v2427, %v2426
        %v2437 = vpack.c.b16 %v2429, %v2428
        %v2462 = vunpack.c.l.b16 %v2382
        %v2463 = vunpack.c.l.b16 %v2383
        %v2464 = vunpack.c.l.b16 %v2384
        %v2465 = vunpack.c.l.b16 %v2385
        %v2466 = vunpack.c.l.b16 %v2386
        %v2467 = vunpack.c.l.b16 %v2387
        %v2468 = vunpack.c.l.b16 %v2388
        %v2469 = vunpack.c.l.b16 %v2389
        %v2470 = vunpack.c.l.b16 %v2390
        %v2471 = vunpack.c.l.b16 %v2391
        %v2472 = vunpack.c.l.b16 %v2392
        %v2473 = vunpack.c.l.b16 %v2393
        %v2474 = vunpack.c.l.b16 %v2394
        %v2475 = vunpack.c.l.b16 %v2395
        %v2476 = vunpack.c.l.b16 %v2396
        %v2477 = vunpack.c.l.b16 %v2397
        %v2478 = vpack.c.b16 %v2463, %v2462
        %v2479 = vpack.c.b16 %v2465, %v2464
        %v2480 = vpack.c.b16 %v2467, %v2466
        %v2481 = vpack.c.b16 %v2469, %v2468
        %v2482 = vpack.c.b16 %v2471, %v2470
        %v2483 = vpack.c.b16 %v2473, %v2472
        %v2484 = vpack.c.b16 %v2475, %v2474
        %v2485 = vpack.c.b16 %v2477, %v2476
        %2494 = vmatprep.subr.bf16.mxu0 0
        %2495 = vmatpush1.bf16.msra.mxu0 %v2485
        %2496 = vmatprep.subr.bf16.mxu0 0
        %2497 = vmatpush1.bf16.msra.mxu0 %v2484
        %2498 = vmatprep.subr.bf16.mxu0 0
        %2499 = vmatpush1.bf16.msra.mxu0 %v2483
        %2500 = vmatprep.subr.bf16.mxu0 0
        %2501 = vmatpush1.bf16.msra.mxu0 %v2482
        %2502 = vmatprep.subr.bf16.mxu0 0
        %2503 = vmatpush1.bf16.msra.mxu0 %v2481
        %2504 = vmatprep.subr.bf16.mxu0 0
        %2505 = vmatpush1.bf16.msra.mxu0 %v2480
        %2506 = vmatprep.subr.bf16.mxu0 0
        %2507 = vmatpush1.bf16.msra.mxu0 %v2479
        %2508 = vmatprep.subr.bf16.mxu0 0
        %2509 = vmatpush1.bf16.msra.mxu0 %v2478
        %2510 = vmatprep.subr.bf16.mxu0 0
        %2511 = vmatpush2.bf16.msra.mxu0 0
        %2512 = vmatprep.subr.bf16.mxu0 0
        %2513 = vmatpush2.bf16.msra.mxu0 0
        %2514 = vmatprep.subr.bf16.mxu0 0
        %2515 = vmatpush2.bf16.msra.mxu0 0
        %2516 = vmatprep.subr.bf16.mxu0 0
        %2517 = vmatpush2.bf16.msra.mxu0 0
        %2518 = vmatprep.subr.bf16.mxu0 0
        %2519 = vmatpush2.bf16.msra.mxu0 0
        %2520 = vmatprep.subr.bf16.mxu0 0
        %2521 = vmatpush2.bf16.msra.mxu0 0
        %2522 = vmatprep.subr.bf16.mxu0 0
        %2523 = vmatpush2.bf16.msra.mxu0 0
        %2524 = vmatprep.subr.bf16.mxu0 0
        %2525 = vmatpush2.bf16.msra.mxu0 0
        %2526 = vmatprep.mubr.bf16.mxu0 0
        %2527 = vmatmul.mubr.bf16.gmra.mxu0 %v2430
        %v2528 = vpop.f32.mrf.mxu0
        %v2529 = vadd.f32 %v2366, %v2528
        %v2530 = vpop.f32.mrf.mxu0
        %v2531 = vpop.f32.mrf.mxu0
        %v2532 = vadd.f32 %v2367, %v2531
        %v2533 = vpop.f32.mrf.mxu0
        %2534 = vmatprep.mubr.bf16.mxu0 0
        %2535 = vmatmul.mubr.bf16.gmra.mxu0 %v2431
        %v2536 = vpop.f32.mrf.mxu0
        %v2537 = vadd.f32 %v2368, %v2536
        %v2538 = vpop.f32.mrf.mxu0
        %v2539 = vpop.f32.mrf.mxu0
        %v2540 = vadd.f32 %v2369, %v2539
        %v2541 = vpop.f32.mrf.mxu0
        %2542 = vmatprep.mubr.bf16.mxu0 0
        %2543 = vmatmul.mubr.bf16.gmra.mxu0 %v2432
        %v2544 = vpop.f32.mrf.mxu0
        %v2545 = vadd.f32 %v2370, %v2544
        %v2546 = vpop.f32.mrf.mxu0
        %v2547 = vpop.f32.mrf.mxu0
        %v2548 = vadd.f32 %v2371, %v2547
        %v2549 = vpop.f32.mrf.mxu0
        %2550 = vmatprep.mubr.bf16.mxu0 0
        %2551 = vmatmul.mubr.bf16.gmra.mxu0 %v2433
        %v2552 = vpop.f32.mrf.mxu0
        %v2553 = vadd.f32 %v2372, %v2552
        %v2554 = vpop.f32.mrf.mxu0
        %v2555 = vpop.f32.mrf.mxu0
        %v2556 = vadd.f32 %v2373, %v2555
        %v2557 = vpop.f32.mrf.mxu0
        %2558 = vmatprep.mubr.bf16.mxu0 0
        %2559 = vmatmul.mubr.bf16.gmra.mxu0 %v2434
        %v2560 = vpop.f32.mrf.mxu0
        %v2561 = vadd.f32 %v2374, %v2560
        %v2562 = vpop.f32.mrf.mxu0
        %v2563 = vpop.f32.mrf.mxu0
        %v2564 = vadd.f32 %v2375, %v2563
        %v2565 = vpop.f32.mrf.mxu0
        %2566 = vmatprep.mubr.bf16.mxu0 0
        %2567 = vmatmul.mubr.bf16.gmra.mxu0 %v2435
        %v2568 = vpop.f32.mrf.mxu0
        %v2569 = vadd.f32 %v2376, %v2568
        %v2570 = vpop.f32.mrf.mxu0
        %v2571 = vpop.f32.mrf.mxu0
        %v2572 = vadd.f32 %v2377, %v2571
        %v2573 = vpop.f32.mrf.mxu0
        %2574 = vmatprep.mubr.bf16.mxu0 0
        %2575 = vmatmul.mubr.bf16.gmra.mxu0 %v2436
        %v2576 = vpop.f32.mrf.mxu0
        %v2577 = vadd.f32 %v2378, %v2576
        %v2578 = vpop.f32.mrf.mxu0
        %v2579 = vpop.f32.mrf.mxu0
        %v2580 = vadd.f32 %v2379, %v2579
        %v2581 = vpop.f32.mrf.mxu0
        %2582 = vmatprep.mubr.bf16.mxu0 0
        %2583 = vmatmul.mubr.bf16.gmra.mxu0 %v2437
        %v2584 = vpop.f32.mrf.mxu0
        %v2585 = vadd.f32 %v2380, %v2584
        %v2586 = vpop.f32.mrf.mxu0
        %v2587 = vpop.f32.mrf.mxu0
        %v2588 = vadd.f32 %v2381, %v2587
        %v2589 = vpop.f32.mrf.mxu0
        %2590 = vdwg.mxu0
        %2591 = vst [vmem:[%s319] sm:$0xff] %v2529
        %2592 = vst [vmem:[%s319 + $0x8] sm:$0xff] %v2532
        %2593 = vst [vmem:[%s319 + $0x10] sm:$0xff] %v2537
        %2594 = vst [vmem:[%s319 + $0x18] sm:$0xff] %v2540
        %2595 = vst [vmem:[%s319 + $0x20] sm:$0xff] %v2545
        %2596 = vst [vmem:[%s319 + $0x28] sm:$0xff] %v2548
        %2597 = vst [vmem:[%s319 + $0x30] sm:$0xff] %v2553
        %2598 = vst [vmem:[%s319 + $0x38] sm:$0xff] %v2556
        %2599 = vst [vmem:[%s319 + $0x40] sm:$0xff] %v2561
        %2600 = vst [vmem:[%s319 + $0x48] sm:$0xff] %v2564
        %2601 = vst [vmem:[%s319 + $0x50] sm:$0xff] %v2569
        %2602 = vst [vmem:[%s319 + $0x58] sm:$0xff] %v2572
        %2603 = vst [vmem:[%s319 + $0x60] sm:$0xff] %v2577
        %2604 = vst [vmem:[%s319 + $0x68] sm:$0xff] %v2580
        %2605 = vst [vmem:[%s319 + $0x70] sm:$0xff] %v2585
        %2606 = vst [vmem:[%s319 + $0x78] sm:$0xff] %v2588
        %s2607 = scalar_lea.vmem [#allocation3], 64
        %v2608 = vld [vmem:[%s2607] sm:$0xf]
        %v2609 = vld [vmem:[%s2607 + $0x4] sm:$0xf]
        %v2610 = vld [vmem:[%s2607 + $0x8] sm:$0xf]
        %v2611 = vld [vmem:[%s2607 + $0xc] sm:$0xf]
        %v2612 = vld [vmem:[%s2607 + $0x10] sm:$0xf]
        %v2613 = vld [vmem:[%s2607 + $0x14] sm:$0xf]
        %v2614 = vld [vmem:[%s2607 + $0x18] sm:$0xf]
        %v2615 = vld [vmem:[%s2607 + $0x1c] sm:$0xf]
        %v2616 = vld [vmem:[%s2607 + $0x20] sm:$0xf]
        %v2617 = vld [vmem:[%s2607 + $0x24] sm:$0xf]
        %v2618 = vld [vmem:[%s2607 + $0x28] sm:$0xf]
        %v2619 = vld [vmem:[%s2607 + $0x2c] sm:$0xf]
        %v2620 = vld [vmem:[%s2607 + $0x30] sm:$0xf]
        %v2621 = vld [vmem:[%s2607 + $0x34] sm:$0xf]
        %v2622 = vld [vmem:[%s2607 + $0x38] sm:$0xf]
        %v2623 = vld [vmem:[%s2607 + $0x3c] sm:$0xf]
        %v2640 = vunpack.c.l.b16 %v2309
        %v2641 = vunpack.c.l.b16 %v2310
        %v2642 = vunpack.c.l.b16 %v2311
        %v2643 = vunpack.c.l.b16 %v2312
        %v2644 = vunpack.c.l.b16 %v2313
        %v2645 = vunpack.c.l.b16 %v2314
        %v2646 = vunpack.c.l.b16 %v2315
        %v2647 = vunpack.c.l.b16 %v2316
        %v2648 = vunpack.c.l.b16 %v2317
        %v2649 = vunpack.c.l.b16 %v2318
        %v2650 = vunpack.c.l.b16 %v2319
        %v2651 = vunpack.c.l.b16 %v2320
        %v2652 = vunpack.c.l.b16 %v2321
        %v2653 = vunpack.c.l.b16 %v2322
        %v2654 = vunpack.c.l.b16 %v2323
        %v2655 = vunpack.c.l.b16 %v2324
        %v2656 = vpack.c.b16 %v2641, %v2640
        %v2657 = vpack.c.b16 %v2643, %v2642
        %v2658 = vpack.c.b16 %v2645, %v2644
        %v2659 = vpack.c.b16 %v2647, %v2646
        %v2660 = vpack.c.b16 %v2649, %v2648
        %v2661 = vpack.c.b16 %v2651, %v2650
        %v2662 = vpack.c.b16 %v2653, %v2652
        %v2663 = vpack.c.b16 %v2655, %v2654
        %v2688 = vunpack.c.l.b16 %v2608
        %v2689 = vunpack.c.l.b16 %v2609
        %v2690 = vunpack.c.l.b16 %v2610
        %v2691 = vunpack.c.l.b16 %v2611
        %v2692 = vunpack.c.l.b16 %v2612
        %v2693 = vunpack.c.l.b16 %v2613
        %v2694 = vunpack.c.l.b16 %v2614
        %v2695 = vunpack.c.l.b16 %v2615
        %v2696 = vunpack.c.l.b16 %v2616
        %v2697 = vunpack.c.l.b16 %v2617
        %v2698 = vunpack.c.l.b16 %v2618
        %v2699 = vunpack.c.l.b16 %v2619
        %v2700 = vunpack.c.l.b16 %v2620
        %v2701 = vunpack.c.l.b16 %v2621
        %v2702 = vunpack.c.l.b16 %v2622
        %v2703 = vunpack.c.l.b16 %v2623
        %v2704 = vpack.c.b16 %v2689, %v2688
        %v2705 = vpack.c.b16 %v2691, %v2690
        %v2706 = vpack.c.b16 %v2693, %v2692
        %v2707 = vpack.c.b16 %v2695, %v2694
        %v2708 = vpack.c.b16 %v2697, %v2696
        %v2709 = vpack.c.b16 %v2699, %v2698
        %v2710 = vpack.c.b16 %v2701, %v2700
        %v2711 = vpack.c.b16 %v2703, %v2702
        %2720 = vmatprep.subr.bf16.mxu0 0
        %2721 = vmatpush1.bf16.msra.mxu0 %v2711
        %2722 = vmatprep.subr.bf16.mxu0 0
        %2723 = vmatpush1.bf16.msra.mxu0 %v2710
        %2724 = vmatprep.subr.bf16.mxu0 0
        %2725 = vmatpush1.bf16.msra.mxu0 %v2709
        %2726 = vmatprep.subr.bf16.mxu0 0
        %2727 = vmatpush1.bf16.msra.mxu0 %v2708
        %2728 = vmatprep.subr.bf16.mxu0 0
        %2729 = vmatpush1.bf16.msra.mxu0 %v2707
        %2730 = vmatprep.subr.bf16.mxu0 0
        %2731 = vmatpush1.bf16.msra.mxu0 %v2706
        %2732 = vmatprep.subr.bf16.mxu0 0
        %2733 = vmatpush1.bf16.msra.mxu0 %v2705
        %2734 = vmatprep.subr.bf16.mxu0 0
        %2735 = vmatpush1.bf16.msra.mxu0 %v2704
        %2736 = vmatprep.subr.bf16.mxu0 0
        %2737 = vmatpush2.bf16.msra.mxu0 0
        %2738 = vmatprep.subr.bf16.mxu0 0
        %2739 = vmatpush2.bf16.msra.mxu0 0
        %2740 = vmatprep.subr.bf16.mxu0 0
        %2741 = vmatpush2.bf16.msra.mxu0 0
        %2742 = vmatprep.subr.bf16.mxu0 0
        %2743 = vmatpush2.bf16.msra.mxu0 0
        %2744 = vmatprep.subr.bf16.mxu0 0
        %2745 = vmatpush2.bf16.msra.mxu0 0
        %2746 = vmatprep.subr.bf16.mxu0 0
        %2747 = vmatpush2.bf16.msra.mxu0 0
        %2748 = vmatprep.subr.bf16.mxu0 0
        %2749 = vmatpush2.bf16.msra.mxu0 0
        %2750 = vmatprep.subr.bf16.mxu0 0
        %2751 = vmatpush2.bf16.msra.mxu0 0
        %2752 = vmatprep.mubr.bf16.mxu0 0
        %2753 = vmatmul.mubr.bf16.gmra.mxu0 %v2656
        %v2754 = vpop.f32.mrf.mxu0
        %v2755 = vadd.f32 %v2366, %v2754
        %v2756 = vpop.f32.mrf.mxu0
        %v2757 = vpop.f32.mrf.mxu0
        %v2758 = vadd.f32 %v2367, %v2757
        %v2759 = vpop.f32.mrf.mxu0
        %2760 = vmatprep.mubr.bf16.mxu0 0
        %2761 = vmatmul.mubr.bf16.gmra.mxu0 %v2657
        %v2762 = vpop.f32.mrf.mxu0
        %v2763 = vadd.f32 %v2368, %v2762
        %v2764 = vpop.f32.mrf.mxu0
        %v2765 = vpop.f32.mrf.mxu0
        %v2766 = vadd.f32 %v2369, %v2765
        %v2767 = vpop.f32.mrf.mxu0
        %2768 = vmatprep.mubr.bf16.mxu0 0
        %2769 = vmatmul.mubr.bf16.gmra.mxu0 %v2658
        %v2770 = vpop.f32.mrf.mxu0
        %v2771 = vadd.f32 %v2370, %v2770
        %v2772 = vpop.f32.mrf.mxu0
        %v2773 = vpop.f32.mrf.mxu0
        %v2774 = vadd.f32 %v2371, %v2773
        %v2775 = vpop.f32.mrf.mxu0
        %2776 = vmatprep.mubr.bf16.mxu0 0
        %2777 = vmatmul.mubr.bf16.gmra.mxu0 %v2659
        %v2778 = vpop.f32.mrf.mxu0
        %v2779 = vadd.f32 %v2372, %v2778
        %v2780 = vpop.f32.mrf.mxu0
        %v2781 = vpop.f32.mrf.mxu0
        %v2782 = vadd.f32 %v2373, %v2781
        %v2783 = vpop.f32.mrf.mxu0
        %2784 = vmatprep.mubr.bf16.mxu0 0
        %2785 = vmatmul.mubr.bf16.gmra.mxu0 %v2660
        %v2786 = vpop.f32.mrf.mxu0
        %v2787 = vadd.f32 %v2374, %v2786
        %v2788 = vpop.f32.mrf.mxu0
        %v2789 = vpop.f32.mrf.mxu0
        %v2790 = vadd.f32 %v2375, %v2789
        %v2791 = vpop.f32.mrf.mxu0
        %2792 = vmatprep.mubr.bf16.mxu0 0
        %2793 = vmatmul.mubr.bf16.gmra.mxu0 %v2661
        %v2794 = vpop.f32.mrf.mxu0
        %v2795 = vadd.f32 %v2376, %v2794
        %v2796 = vpop.f32.mrf.mxu0
        %v2797 = vpop.f32.mrf.mxu0
        %v2798 = vadd.f32 %v2377, %v2797
        %v2799 = vpop.f32.mrf.mxu0
        %2800 = vmatprep.mubr.bf16.mxu0 0
        %2801 = vmatmul.mubr.bf16.gmra.mxu0 %v2662
        %v2802 = vpop.f32.mrf.mxu0
        %v2803 = vadd.f32 %v2378, %v2802
        %v2804 = vpop.f32.mrf.mxu0
        %v2805 = vpop.f32.mrf.mxu0
        %v2806 = vadd.f32 %v2379, %v2805
        %v2807 = vpop.f32.mrf.mxu0
        %2808 = vmatprep.mubr.bf16.mxu0 0
        %2809 = vmatmul.mubr.bf16.gmra.mxu0 %v2663
        %v2810 = vpop.f32.mrf.mxu0
        %v2811 = vadd.f32 %v2380, %v2810
        %v2812 = vpop.f32.mrf.mxu0
        %v2813 = vpop.f32.mrf.mxu0
        %v2814 = vadd.f32 %v2381, %v2813
        %v2815 = vpop.f32.mrf.mxu0
        %2816 = vdwg.mxu0
        %s2817 = scalar_lea.vmem %s319, 128 [#allocation4]
        %2818 = vst [vmem:[%s2817] sm:$0xff] %v2755
        %2819 = vst [vmem:[%s2817 + $0x8] sm:$0xff] %v2758
        %2820 = vst [vmem:[%s2817 + $0x10] sm:$0xff] %v2763
        %2821 = vst [vmem:[%s2817 + $0x18] sm:$0xff] %v2766
        %2822 = vst [vmem:[%s2817 + $0x20] sm:$0xff] %v2771
        %2823 = vst [vmem:[%s2817 + $0x28] sm:$0xff] %v2774
        %2824 = vst [vmem:[%s2817 + $0x30] sm:$0xff] %v2779
        %2825 = vst [vmem:[%s2817 + $0x38] sm:$0xff] %v2782
        %2826 = vst [vmem:[%s2817 + $0x40] sm:$0xff] %v2787
        %2827 = vst [vmem:[%s2817 + $0x48] sm:$0xff] %v2790
        %2828 = vst [vmem:[%s2817 + $0x50] sm:$0xff] %v2795
        %2829 = vst [vmem:[%s2817 + $0x58] sm:$0xff] %v2798
        %2830 = vst [vmem:[%s2817 + $0x60] sm:$0xff] %v2803
        %2831 = vst [vmem:[%s2817 + $0x68] sm:$0xff] %v2806
        %2832 = vst [vmem:[%s2817 + $0x70] sm:$0xff] %v2811
        %2833 = vst [vmem:[%s2817 + $0x78] sm:$0xff] %v2814
        %s2834 = sand.u32 %s202, 1
        %s2835 = scalar_lea.sflag [#allocation5], %s2834
        %s2836 = sand.u32 %s202, 1
        %s2837 = smul.addr %s2836, 256
        %s2838 = scalar_lea.vmem [#allocation4], %s2837
        // Predicated region
        $region49: #{tpu_custom_call.1} parent=43 // pred_check
          %p2839 = pneg %p212
        $region50: #{tpu_custom_call.1} parent=43 // pred_check_branch
          %2841 = sbr.rel (%p2839) target = $region52
        $region51: #{tpu_custom_call.1} parent=43 // pred_region
          %s2842 = smul.u32 2, %s26
          %s2843 = smul.u32 16, %s27
          %s2845 = ssub.s32 4096, 4096
          %2846 = vsyncadd %s2835, %s2845
          %s2847 = smul.addr %s2842, 16
          %s2848 = sadd.s32 %s2843, %s2847
          %s2849 = smul.addr %s25, 64
          %s2850 = sadd.s32 %s2848, %s2849
          %s2851 = smul.addr %s2850, 128
          %s2852 = scalar_lea.hbm %s6, %s2851
          %s2853 = sshll.u32 %s2838, 4
          %s2854 = int_to_ptr.vmem [resolvable:$true] %s2853
          %2859 = dma.vmem_to_hbm [thread:$0]  %s2854, 4096, %s2852, %s2835, 128, 128, 8
        $region52: #{tpu_custom_call.1} parent=43 // pred_fallthru
          _
      $region44: #{tpu_custom_call.1} parent=5 // pred_fallthru
        _
      %p2860 = scmp.le.s32.totalorder 2, %s15
      // Predicated region
      $region53: #{tpu_custom_call.1} parent=5 // pred_check
        %p2861 = pneg %p2860
      $region54: #{tpu_custom_call.1} parent=5 // pred_check_branch
        %2863 = sbr.rel (%p2861) target = $region56
      $region55: #{tpu_custom_call.1} parent=5 // pred_region
        %s2864 = ssub.s32 %s15, 2
        // Predicated region
        $region57: #{tpu_custom_call.1} parent=55 // pred_check
          %p2865 = pneg %p218
        $region58: #{tpu_custom_call.1} parent=55 // pred_check_branch
          %2867 = sbr.rel (%p2865) target = $region60
        $region59: #{tpu_custom_call.1} parent=55 // pred_region
          %s2868 = sand.u32 %s203, 1
          %s2869 = scalar_lea.sflag [#allocation5], %s2868
          %s2870 = sand.u32 %s203, 1
          %s2871 = smul.addr %s2870, 256
          %s2872 = scalar_lea.vmem [#allocation4], %s2871
          %2873 = dma.done %s2869, 4096
        $region60: #{tpu_custom_call.1} parent=55 // pred_fallthru
          _
      $region56: #{tpu_custom_call.1} parent=5 // pred_fallthru
        _
    $region6: #{tpu_custom_call.1} parent=1 // loop_footer
      %s19 = sadd.s32 1, %s15
    $region7: #{tpu_custom_call.1} parent=1 // loop_footer_branch
      %14 = sbr.rel target = $region3
    $region8: #{tpu_custom_call.1} parent=1 // loop_exit
      _
    %2874 = vsyncpa [#allocation5], 1
    %s2875 = scalar_lea.sflag [#allocation5], 1
    %2876 = vsyncpa %s2875, 1

</llo_original>
